<compile_context>
chip_gen: v7x
topology: tpu7x:2x2x1
jax: 0.10.0
libtpu: 0.0.40
codegen_flags: <defaults>
</compile_context>

<pallas_src>
import jax
import jax.numpy as jnp
from jax.experimental import pallas as pl
from jax.experimental.pallas import tpu as pltpu

NUM_HEADS = 4
SIGMOID = False
LN_EPS = 1e-5


def mha_kernel(x_ref, w_ref, wb_ref, p_ref, pb_ref, g_ref, b_ref,
               y_ref, attn_ref):
    # x_ref: (B, S, D)   w_ref: (D, 3D)  wb_ref: (1, 3D)
    # p_ref: (D, D)      pb_ref/g_ref/b_ref: (1, D)
    # y_ref: (B, S, D)   attn_ref: (B, H, S, S)
    B, S, D = x_ref.shape
    H = NUM_HEADS
    HD = D // H

    x = x_ref[...]                         # (B, S, D)
    x2 = x.reshape(B * S, D)               # leading-dim merge (layout preserving)

    # ---- QKV projection: one (B*S, D) x (D, 3D) GEMM on the MXU ----
    qkv = jnp.dot(x2, w_ref[...], preferred_element_type=jnp.float32) + wb_ref[...]

    scale = 1.0 / (D ** 0.5)   # torch code divides by sqrt(d), NOT sqrt(head_dim)

    attn_w = []
    out_heads = []
    for hh in range(H):                    # H = 4, unrolled; each step batched over B
        lo = hh * HD
        qh = (qkv[:, lo:lo + HD] * scale).reshape(B, S, HD)
        kh = qkv[:, D + lo:D + lo + HD].reshape(B, S, HD)
        vh = qkv[:, 2 * D + lo:2 * D + lo + HD].reshape(B, S, HD)

        # Batched over B, contracting the last dims -> feeds the MXU directly.
        logits = jnp.einsum('bqd,bkd->bqk', qh, kh,
                            preferred_element_type=jnp.float32)        # (B, S, S)
        if SIGMOID:
            w_h = jax.nn.sigmoid(logits)
        else:
            m = jnp.max(logits, axis=-1, keepdims=True)
            p = jnp.exp(logits - m)                                     # EUP
            denom = jnp.sum(p, axis=-1, keepdims=True)                  # (B, S, 1)
            inv = pl.reciprocal(denom, approx=True)                     # EUP slot
            inv = inv * (2.0 - denom * inv)     # 1 Newton step on (B,S,1): f32-exact
            w_h = p * inv

        attn_w.append(w_h)
        out_heads.append(jnp.einsum('bqk,bkd->bqd', w_h, vh,
                                    preferred_element_type=jnp.float32))  # (B, S, HD)

    # Single fused store of the attention weights.
    attn_ref[...] = jnp.stack(attn_w, axis=1)                            # (B, H, S, S)

    attn_out = jnp.concatenate(out_heads, axis=-1).reshape(B * S, D)     # (B*S, D)

    # ---- output projection (MXU), residual, LayerNorm (all on the fused batch) ----
    out = jnp.dot(attn_out, p_ref[...], preferred_element_type=jnp.float32) + pb_ref[...]
    # nn.Dropout(0.2) is identity in eval mode.
    # TODO(synk): training-mode dropout (pltpu.prng_* masking) not implemented.

    resid = x2 + out
    mean = jnp.mean(resid, axis=-1, keepdims=True)
    ctr = resid - mean
    var = jnp.mean(ctr * ctr, axis=-1, keepdims=True)
    xhat = ctr * jax.lax.rsqrt(var + LN_EPS)
    y = xhat * g_ref[...] + b_ref[...]
    y_ref[...] = y.reshape(B, S, D)


def multi_head_attention(x, Ww, Wb, Pw, Pb, gamma, beta):
    B, S, D = x.shape
    H = NUM_HEADS

    def full(shape):
        return pl.BlockSpec(shape, lambda i, _n=len(shape): (0,) * _n)

    # TODO(synk): for production-scale S/D, tile Ww along the 3D axis and the attention
    # output over query blocks so resident VMEM stays under the v7x 64 MiB cap.
    return pl.pallas_call(
        mha_kernel,
        out_shape=(jax.ShapeDtypeStruct((B, S, D), jnp.float32),
                   jax.ShapeDtypeStruct((B, H, S, S), jnp.float32)),
        grid=(1,),   # whole problem in one step; the batch is fused inside the kernel
        in_specs=[
            full((B, S, D)),        # x
            full((D, 3 * D)),       # QKV weight (resident)
            full((1, 3 * D)),       # QKV bias
            full((D, D)),           # proj weight
            full((1, D)),           # proj bias
            full((1, D)),           # LN gamma
            full((1, D)),           # LN beta
        ],
        out_specs=(full((B, S, D)), full((B, H, S, S))),
        compiler_params=pltpu.CompilerParams(dimension_semantics=("parallel",)),
    )(x, Ww, Wb, Pw, Pb, gamma, beta)


def ref_forward(x, Ww, Wb, Pw, Pb, gamma, beta):
    """Pure-JAX reference mirroring the PyTorch forward (eval mode)."""
    B, S, D = x.shape
    H, HD = NUM_HEADS, D // NUM_HEADS
    qkv = x @ Ww + Wb[0]
    q, k, v = jnp.split(qkv, 3, axis=-1)
    rsh = lambda z: z.reshape(B, S, H, HD).transpose(0, 2, 1, 3)
    q, k, v = rsh(q), rsh(k), rsh(v)
    attn = jnp.einsum('bhqd,bhkd->bhqk', q, k) / (D ** 0.5)
    w = jax.nn.sigmoid(attn) if SIGMOID else jax.nn.softmax(attn, axis=-1)
    o = jnp.einsum('bhqk,bhkd->bhqd', w, v).transpose(0, 2, 1, 3).reshape(B, S, D)
    out = o @ Pw + Pb[0]
    r = x + out
    mean = r.mean(-1, keepdims=True)
    var = ((r - mean) ** 2).mean(-1, keepdims=True)
    y = (r - mean) / jnp.sqrt(var + LN_EPS) * gamma[0] + beta[0]
    return y, w


if __name__ == "__main__":
    B, S, D = 2, 8, 32

    key = jax.random.PRNGKey(0)
    kx, kw, kwb, kp, kpb = jax.random.split(key, 5)

    x = jax.random.normal(kx, (B, S, D), dtype=jnp.float32)

    # Deterministic parameter init (shapes as implied by nn.Linear / nn.LayerNorm).
    Ww = jax.random.normal(kw, (D, 3 * D), dtype=jnp.float32) * (1.0 / D ** 0.5)
    Wb = jax.random.normal(kwb, (1, 3 * D), dtype=jnp.float32) * 0.02
    Pw = jax.random.normal(kp, (D, D), dtype=jnp.float32) * (1.0 / D ** 0.5)
    Pb = jax.random.normal(kpb, (1, D), dtype=jnp.float32) * 0.02
    gamma = jnp.ones((1, D), dtype=jnp.float32)   # LayerNorm default init
    beta = jnp.zeros((1, D), dtype=jnp.float32)

    y, attn_w = multi_head_attention(x, Ww, Wb, Pw, Pb, gamma, beta)
    jax.block_until_ready((y, attn_w))

    y_ref, attn_ref = ref_forward(x, Ww, Wb, Pw, Pb, gamma, beta)
    assert y.shape == (B, S, D) and attn_w.shape == (B, NUM_HEADS, S, S)
    assert jnp.allclose(y, y_ref, atol=1e-4, rtol=1e-4)
    assert jnp.allclose(attn_w, attn_ref, atol=1e-5, rtol=1e-5)

    print("KERNEL_OK")
</pallas_src>

<mosaic_0001>
module attributes {stable_mosaic.version = 11 : i64} {
  func.func @mha_kernel(%arg0: i32, %arg1: memref<2x8x32xf32, #tpu.memory_space<vmem>>, %arg2: memref<32x96xf32, #tpu.memory_space<vmem>>, %arg3: memref<1x96xf32, #tpu.memory_space<vmem>>, %arg4: memref<32x32xf32, #tpu.memory_space<vmem>>, %arg5: memref<1x32xf32, #tpu.memory_space<vmem>>, %arg6: memref<1x32xf32, #tpu.memory_space<vmem>>, %arg7: memref<1x32xf32, #tpu.memory_space<vmem>>, %arg8: memref<2x8x32xf32, #tpu.memory_space<vmem>>, %arg9: memref<2x4x8x8xf32, #tpu.memory_space<vmem>>) attributes {dimension_semantics = [#tpu.dimension_semantics<parallel>], iteration_bounds = array<i64: 1>, scalar_prefetch = 0 : i64, scratch_operands = 0 : i64, tpu.core_type = #tpu.core_type<tc>, window_params = [{pipeline_mode = #tpu.pipeline_mode<synchronous>, transform_indices = @transform_0, window_bounds = array<i64: 2, 8, 32>}, {pipeline_mode = #tpu.pipeline_mode<synchronous>, transform_indices = @transform_1, window_bounds = array<i64: 32, 96>}, {pipeline_mode = #tpu.pipeline_mode<synchronous>, transform_indices = @transform_2, window_bounds = array<i64: 1, 96>}, {pipeline_mode = #tpu.pipeline_mode<synchronous>, transform_indices = @transform_3, window_bounds = array<i64: 32, 32>}, {pipeline_mode = #tpu.pipeline_mode<synchronous>, transform_indices = @transform_4, window_bounds = array<i64: 1, 32>}, {pipeline_mode = #tpu.pipeline_mode<synchronous>, transform_indices = @transform_5, window_bounds = array<i64: 1, 32>}, {pipeline_mode = #tpu.pipeline_mode<synchronous>, transform_indices = @transform_6, window_bounds = array<i64: 1, 32>}, {pipeline_mode = #tpu.pipeline_mode<synchronous>, transform_indices = @transform_7, window_bounds = array<i64: 2, 8, 32>}, {pipeline_mode = #tpu.pipeline_mode<synchronous>, transform_indices = @transform_8, window_bounds = array<i64: 2, 4, 8, 8>}]} {
    %c0 = arith.constant 0 : index
    %c0_0 = arith.constant 0 : index
    %c0_1 = arith.constant 0 : index
    %0 = vector.load %arg1[%c0, %c0_0, %c0_1] : memref<2x8x32xf32, #tpu.memory_space<vmem>>, vector<2x8x32xf32>
    %1 = vector.shape_cast %0 : vector<2x8x32xf32> to vector<16x32xf32>
    %c0_2 = arith.constant 0 : index
    %c0_3 = arith.constant 0 : index
    %2 = vector.load %arg2[%c0_2, %c0_3] : memref<32x96xf32, #tpu.memory_space<vmem>>, vector<32x96xf32>
    %cst = arith.constant dense<0.000000e+00> : vector<16x96xf32>
    %3 = tpu.matmul %1, %2, %cst {dimension_numbers = #tpu.dot_dimension_numbers<[1], [0], [0], [1], [0, 0, 1, 1], [], []>} : vector<16x32xf32>, vector<32x96xf32>, vector<16x96xf32> -> vector<16x96xf32>
    %c0_4 = arith.constant 0 : index
    %c0_5 = arith.constant 0 : index
    %4 = vector.load %arg3[%c0_4, %c0_5] : memref<1x96xf32, #tpu.memory_space<vmem>>, vector<1x96xf32>
    %5 = vector.broadcast %4 : vector<1x96xf32> to vector<16x96xf32>
    %6 = arith.addf %3, %5 : vector<16x96xf32>
    %7 = vector.extract_strided_slice %6 {offsets = [0, 0], sizes = [16, 8], strides = [1, 1]} : vector<16x96xf32> to vector<16x8xf32>
    %cst_6 = arith.constant 0.176776692 : f32
    %8 = vector.broadcast %cst_6 : f32 to vector<16x8xf32>
    %9 = arith.mulf %7, %8 : vector<16x8xf32>
    %10 = vector.shape_cast %9 : vector<16x8xf32> to vector<2x8x8xf32>
    %11 = vector.extract_strided_slice %6 {offsets = [0, 32], sizes = [16, 8], strides = [1, 1]} : vector<16x96xf32> to vector<16x8xf32>
    %12 = vector.shape_cast %11 : vector<16x8xf32> to vector<2x8x8xf32>
    %13 = vector.extract_strided_slice %6 {offsets = [0, 64], sizes = [16, 8], strides = [1, 1]} : vector<16x96xf32> to vector<16x8xf32>
    %14 = vector.shape_cast %13 : vector<16x8xf32> to vector<2x8x8xf32>
    "tpu.trace_start"() <{level = 10 : i32, message = "bqd,bkd->bqk"}> : () -> ()
    %cst_7 = arith.constant dense<0.000000e+00> : vector<2x8x8xf32>
    %15 = tpu.matmul %10, %12, %cst_7 {dimension_numbers = #tpu.dot_dimension_numbers<[2], [2], [1], [1], [0, 0, 0, 1, 1, 1], [0], [0]>} : vector<2x8x8xf32>, vector<2x8x8xf32>, vector<2x8x8xf32> -> vector<2x8x8xf32>
    "tpu.trace_stop"() : () -> ()
    %cst_8 = arith.constant dense<0xFF800000> : vector<2x8xf32>
    %16 = vector.multi_reduction <maximumf>, %15, %cst_8 [2] : vector<2x8x8xf32> to vector<2x8xf32>
    %17 = vector.shape_cast %16 : vector<2x8xf32> to vector<2x8x1xf32>
    %18 = vector.broadcast %17 : vector<2x8x1xf32> to vector<2x8x8xf32>
    %19 = arith.subf %15, %18 : vector<2x8x8xf32>
    %20 = math.exp %19 : vector<2x8x8xf32>
    %cst_9 = arith.constant dense<0.000000e+00> : vector<2x8xf32>
    %21 = vector.multi_reduction <add>, %20, %cst_9 [2] : vector<2x8x8xf32> to vector<2x8xf32>
    %22 = vector.shape_cast %21 : vector<2x8xf32> to vector<2x8x1xf32>
    %23 = tpu.reciprocal %22 {approx = true} : vector<2x8x1xf32> -> vector<2x8x1xf32>
    %24 = arith.mulf %22, %23 : vector<2x8x1xf32>
    %cst_10 = arith.constant 2.000000e+00 : f32
    %25 = vector.broadcast %cst_10 : f32 to vector<2x8x1xf32>
    %26 = arith.subf %25, %24 : vector<2x8x1xf32>
    %27 = arith.mulf %23, %26 : vector<2x8x1xf32>
    %28 = vector.broadcast %27 : vector<2x8x1xf32> to vector<2x8x8xf32>
    %29 = arith.mulf %20, %28 : vector<2x8x8xf32>
    "tpu.trace_start"() <{level = 10 : i32, message = "bqk,bkd->bqd"}> : () -> ()
    %cst_11 = arith.constant dense<0.000000e+00> : vector<2x8x8xf32>
    %30 = tpu.matmul %29, %14, %cst_11 {dimension_numbers = #tpu.dot_dimension_numbers<[2], [1], [1], [2], [0, 0, 0, 1, 1, 2], [0], [0]>} : vector<2x8x8xf32>, vector<2x8x8xf32>, vector<2x8x8xf32> -> vector<2x8x8xf32>
    "tpu.trace_stop"() : () -> ()
    %31 = vector.extract_strided_slice %6 {offsets = [0, 8], sizes = [16, 8], strides = [1, 1]} : vector<16x96xf32> to vector<16x8xf32>
    %cst_12 = arith.constant 0.176776692 : f32
    %32 = vector.broadcast %cst_12 : f32 to vector<16x8xf32>
    %33 = arith.mulf %31, %32 : vector<16x8xf32>
    %34 = vector.shape_cast %33 : vector<16x8xf32> to vector<2x8x8xf32>
    %35 = vector.extract_strided_slice %6 {offsets = [0, 40], sizes = [16, 8], strides = [1, 1]} : vector<16x96xf32> to vector<16x8xf32>
    %36 = vector.shape_cast %35 : vector<16x8xf32> to vector<2x8x8xf32>
    %37 = vector.extract_strided_slice %6 {offsets = [0, 72], sizes = [16, 8], strides = [1, 1]} : vector<16x96xf32> to vector<16x8xf32>
    %38 = vector.shape_cast %37 : vector<16x8xf32> to vector<2x8x8xf32>
    "tpu.trace_start"() <{level = 10 : i32, message = "bqd,bkd->bqk"}> : () -> ()
    %cst_13 = arith.constant dense<0.000000e+00> : vector<2x8x8xf32>
    %39 = tpu.matmul %34, %36, %cst_13 {dimension_numbers = #tpu.dot_dimension_numbers<[2], [2], [1], [1], [0, 0, 0, 1, 1, 1], [0], [0]>} : vector<2x8x8xf32>, vector<2x8x8xf32>, vector<2x8x8xf32> -> vector<2x8x8xf32>
    "tpu.trace_stop"() : () -> ()
    %cst_14 = arith.constant dense<0xFF800000> : vector<2x8xf32>
    %40 = vector.multi_reduction <maximumf>, %39, %cst_14 [2] : vector<2x8x8xf32> to vector<2x8xf32>
    %41 = vector.shape_cast %40 : vector<2x8xf32> to vector<2x8x1xf32>
    %42 = vector.broadcast %41 : vector<2x8x1xf32> to vector<2x8x8xf32>
    %43 = arith.subf %39, %42 : vector<2x8x8xf32>
    %44 = math.exp %43 : vector<2x8x8xf32>
    %cst_15 = arith.constant dense<0.000000e+00> : vector<2x8xf32>
    %45 = vector.multi_reduction <add>, %44, %cst_15 [2] : vector<2x8x8xf32> to vector<2x8xf32>
    %46 = vector.shape_cast %45 : vector<2x8xf32> to vector<2x8x1xf32>
    %47 = tpu.reciprocal %46 {approx = true} : vector<2x8x1xf32> -> vector<2x8x1xf32>
    %48 = arith.mulf %46, %47 : vector<2x8x1xf32>
    %cst_16 = arith.constant 2.000000e+00 : f32
    %49 = vector.broadcast %cst_16 : f32 to vector<2x8x1xf32>
    %50 = arith.subf %49, %48 : vector<2x8x1xf32>
    %51 = arith.mulf %47, %50 : vector<2x8x1xf32>
    %52 = vector.broadcast %51 : vector<2x8x1xf32> to vector<2x8x8xf32>
    %53 = arith.mulf %44, %52 : vector<2x8x8xf32>
    "tpu.trace_start"() <{level = 10 : i32, message = "bqk,bkd->bqd"}> : () -> ()
    %cst_17 = arith.constant dense<0.000000e+00> : vector<2x8x8xf32>
    %54 = tpu.matmul %53, %38, %cst_17 {dimension_numbers = #tpu.dot_dimension_numbers<[2], [1], [1], [2], [0, 0, 0, 1, 1, 2], [0], [0]>} : vector<2x8x8xf32>, vector<2x8x8xf32>, vector<2x8x8xf32> -> vector<2x8x8xf32>
    "tpu.trace_stop"() : () -> ()
    %55 = vector.extract_strided_slice %6 {offsets = [0, 16], sizes = [16, 8], strides = [1, 1]} : vector<16x96xf32> to vector<16x8xf32>
    %cst_18 = arith.constant 0.176776692 : f32
    %56 = vector.broadcast %cst_18 : f32 to vector<16x8xf32>
    %57 = arith.mulf %55, %56 : vector<16x8xf32>
    %58 = vector.shape_cast %57 : vector<16x8xf32> to vector<2x8x8xf32>
    %59 = vector.extract_strided_slice %6 {offsets = [0, 48], sizes = [16, 8], strides = [1, 1]} : vector<16x96xf32> to vector<16x8xf32>
    %60 = vector.shape_cast %59 : vector<16x8xf32> to vector<2x8x8xf32>
    %61 = vector.extract_strided_slice %6 {offsets = [0, 80], sizes = [16, 8], strides = [1, 1]} : vector<16x96xf32> to vector<16x8xf32>
    %62 = vector.shape_cast %61 : vector<16x8xf32> to vector<2x8x8xf32>
    "tpu.trace_start"() <{level = 10 : i32, message = "bqd,bkd->bqk"}> : () -> ()
    %cst_19 = arith.constant dense<0.000000e+00> : vector<2x8x8xf32>
    %63 = tpu.matmul %58, %60, %cst_19 {dimension_numbers = #tpu.dot_dimension_numbers<[2], [2], [1], [1], [0, 0, 0, 1, 1, 1], [0], [0]>} : vector<2x8x8xf32>, vector<2x8x8xf32>, vector<2x8x8xf32> -> vector<2x8x8xf32>
    "tpu.trace_stop"() : () -> ()
    %cst_20 = arith.constant dense<0xFF800000> : vector<2x8xf32>
    %64 = vector.multi_reduction <maximumf>, %63, %cst_20 [2] : vector<2x8x8xf32> to vector<2x8xf32>
    %65 = vector.shape_cast %64 : vector<2x8xf32> to vector<2x8x1xf32>
    %66 = vector.broadcast %65 : vector<2x8x1xf32> to vector<2x8x8xf32>
    %67 = arith.subf %63, %66 : vector<2x8x8xf32>
    %68 = math.exp %67 : vector<2x8x8xf32>
    %cst_21 = arith.constant dense<0.000000e+00> : vector<2x8xf32>
    %69 = vector.multi_reduction <add>, %68, %cst_21 [2] : vector<2x8x8xf32> to vector<2x8xf32>
    %70 = vector.shape_cast %69 : vector<2x8xf32> to vector<2x8x1xf32>
    %71 = tpu.reciprocal %70 {approx = true} : vector<2x8x1xf32> -> vector<2x8x1xf32>
    %72 = arith.mulf %70, %71 : vector<2x8x1xf32>
    %cst_22 = arith.constant 2.000000e+00 : f32
    %73 = vector.broadcast %cst_22 : f32 to vector<2x8x1xf32>
    %74 = arith.subf %73, %72 : vector<2x8x1xf32>
    %75 = arith.mulf %71, %74 : vector<2x8x1xf32>
    %76 = vector.broadcast %75 : vector<2x8x1xf32> to vector<2x8x8xf32>
    %77 = arith.mulf %68, %76 : vector<2x8x8xf32>
    "tpu.trace_start"() <{level = 10 : i32, message = "bqk,bkd->bqd"}> : () -> ()
    %cst_23 = arith.constant dense<0.000000e+00> : vector<2x8x8xf32>
    %78 = tpu.matmul %77, %62, %cst_23 {dimension_numbers = #tpu.dot_dimension_numbers<[2], [1], [1], [2], [0, 0, 0, 1, 1, 2], [0], [0]>} : vector<2x8x8xf32>, vector<2x8x8xf32>, vector<2x8x8xf32> -> vector<2x8x8xf32>
    "tpu.trace_stop"() : () -> ()
    %79 = vector.extract_strided_slice %6 {offsets = [0, 24], sizes = [16, 8], strides = [1, 1]} : vector<16x96xf32> to vector<16x8xf32>
    %cst_24 = arith.constant 0.176776692 : f32
    %80 = vector.broadcast %cst_24 : f32 to vector<16x8xf32>
    %81 = arith.mulf %79, %80 : vector<16x8xf32>
    %82 = vector.shape_cast %81 : vector<16x8xf32> to vector<2x8x8xf32>
    %83 = vector.extract_strided_slice %6 {offsets = [0, 56], sizes = [16, 8], strides = [1, 1]} : vector<16x96xf32> to vector<16x8xf32>
    %84 = vector.shape_cast %83 : vector<16x8xf32> to vector<2x8x8xf32>
    %85 = vector.extract_strided_slice %6 {offsets = [0, 88], sizes = [16, 8], strides = [1, 1]} : vector<16x96xf32> to vector<16x8xf32>
    %86 = vector.shape_cast %85 : vector<16x8xf32> to vector<2x8x8xf32>
    "tpu.trace_start"() <{level = 10 : i32, message = "bqd,bkd->bqk"}> : () -> ()
    %cst_25 = arith.constant dense<0.000000e+00> : vector<2x8x8xf32>
    %87 = tpu.matmul %82, %84, %cst_25 {dimension_numbers = #tpu.dot_dimension_numbers<[2], [2], [1], [1], [0, 0, 0, 1, 1, 1], [0], [0]>} : vector<2x8x8xf32>, vector<2x8x8xf32>, vector<2x8x8xf32> -> vector<2x8x8xf32>
    "tpu.trace_stop"() : () -> ()
    %cst_26 = arith.constant dense<0xFF800000> : vector<2x8xf32>
    %88 = vector.multi_reduction <maximumf>, %87, %cst_26 [2] : vector<2x8x8xf32> to vector<2x8xf32>
    %89 = vector.shape_cast %88 : vector<2x8xf32> to vector<2x8x1xf32>
    %90 = vector.broadcast %89 : vector<2x8x1xf32> to vector<2x8x8xf32>
    %91 = arith.subf %87, %90 : vector<2x8x8xf32>
    %92 = math.exp %91 : vector<2x8x8xf32>
    %cst_27 = arith.constant dense<0.000000e+00> : vector<2x8xf32>
    %93 = vector.multi_reduction <add>, %92, %cst_27 [2] : vector<2x8x8xf32> to vector<2x8xf32>
    %94 = vector.shape_cast %93 : vector<2x8xf32> to vector<2x8x1xf32>
    %95 = tpu.reciprocal %94 {approx = true} : vector<2x8x1xf32> -> vector<2x8x1xf32>
    %96 = arith.mulf %94, %95 : vector<2x8x1xf32>
    %cst_28 = arith.constant 2.000000e+00 : f32
    %97 = vector.broadcast %cst_28 : f32 to vector<2x8x1xf32>
    %98 = arith.subf %97, %96 : vector<2x8x1xf32>
    %99 = arith.mulf %95, %98 : vector<2x8x1xf32>
    %100 = vector.broadcast %99 : vector<2x8x1xf32> to vector<2x8x8xf32>
    %101 = arith.mulf %92, %100 : vector<2x8x8xf32>
    "tpu.trace_start"() <{level = 10 : i32, message = "bqk,bkd->bqd"}> : () -> ()
    %cst_29 = arith.constant dense<0.000000e+00> : vector<2x8x8xf32>
    %102 = tpu.matmul %101, %86, %cst_29 {dimension_numbers = #tpu.dot_dimension_numbers<[2], [1], [1], [2], [0, 0, 0, 1, 1, 2], [0], [0]>} : vector<2x8x8xf32>, vector<2x8x8xf32>, vector<2x8x8xf32> -> vector<2x8x8xf32>
    "tpu.trace_stop"() : () -> ()
    %103 = vector.shape_cast %29 : vector<2x8x8xf32> to vector<2x1x8x8xf32>
    %104 = vector.shape_cast %53 : vector<2x8x8xf32> to vector<2x1x8x8xf32>
    %105 = vector.shape_cast %77 : vector<2x8x8xf32> to vector<2x1x8x8xf32>
    %106 = vector.shape_cast %101 : vector<2x8x8xf32> to vector<2x1x8x8xf32>
    %107 = tpu.concatenate %103, %104, %105, %106 in 1 : vector<2x1x8x8xf32>, vector<2x1x8x8xf32>, vector<2x1x8x8xf32>, vector<2x1x8x8xf32> -> vector<2x4x8x8xf32>
    %c0_30 = arith.constant 0 : index
    %c0_31 = arith.constant 0 : index
    %c0_32 = arith.constant 0 : index
    %c0_33 = arith.constant 0 : index
    %108 = vector.load %arg9[%c0_30, %c0_31, %c0_32, %c0_33] : memref<2x4x8x8xf32, #tpu.memory_space<vmem>>, vector<2x4x8x8xf32>
    tpu.vector_store %arg9[%c0_30, %c0_31, %c0_32, %c0_33], %107 {strides = array<i32>} : memref<2x4x8x8xf32, #tpu.memory_space<vmem>>, vector<2x4x8x8xf32>,
    %109 = tpu.concatenate %30, %54, %78, %102 in 2 : vector<2x8x8xf32>, vector<2x8x8xf32>, vector<2x8x8xf32>, vector<2x8x8xf32> -> vector<2x8x32xf32>
    %110 = vector.shape_cast %109 : vector<2x8x32xf32> to vector<16x32xf32>
    %c0_34 = arith.constant 0 : index
    %c0_35 = arith.constant 0 : index
    %111 = vector.load %arg4[%c0_34, %c0_35] : memref<32x32xf32, #tpu.memory_space<vmem>>, vector<32x32xf32>
    %cst_36 = arith.constant dense<0.000000e+00> : vector<16x32xf32>
    %112 = tpu.matmul %110, %111, %cst_36 {dimension_numbers = #tpu.dot_dimension_numbers<[1], [0], [0], [1], [0, 0, 1, 1], [], []>} : vector<16x32xf32>, vector<32x32xf32>, vector<16x32xf32> -> vector<16x32xf32>
    %c0_37 = arith.constant 0 : index
    %c0_38 = arith.constant 0 : index
    %113 = vector.load %arg5[%c0_37, %c0_38] : memref<1x32xf32, #tpu.memory_space<vmem>>, vector<1x32xf32>
    %114 = vector.broadcast %113 : vector<1x32xf32> to vector<16x32xf32>
    %115 = arith.addf %112, %114 : vector<16x32xf32>
    %116 = arith.addf %1, %115 : vector<16x32xf32>
    %cst_39 = arith.constant dense<0.000000e+00> : vector<16xf32>
    %117 = vector.multi_reduction <add>, %116, %cst_39 [1] : vector<16x32xf32> to vector<16xf32>
    %118 = vector.shape_cast %117 : vector<16xf32> to vector<16x1xf32>
    %cst_40 = arith.constant 3.200000e+01 : f32
    %119 = vector.broadcast %cst_40 : f32 to vector<16x1xf32>
    %120 = arith.divf %118, %119 : vector<16x1xf32>
    %121 = vector.broadcast %120 : vector<16x1xf32> to vector<16x32xf32>
    %122 = arith.subf %116, %121 : vector<16x32xf32>
    %123 = arith.mulf %122, %122 : vector<16x32xf32>
    %cst_41 = arith.constant dense<0.000000e+00> : vector<16xf32>
    %124 = vector.multi_reduction <add>, %123, %cst_41 [1] : vector<16x32xf32> to vector<16xf32>
    %125 = vector.shape_cast %124 : vector<16xf32> to vector<16x1xf32>
    %cst_42 = arith.constant 3.200000e+01 : f32
    %126 = vector.broadcast %cst_42 : f32 to vector<16x1xf32>
    %127 = arith.divf %125, %126 : vector<16x1xf32>
    %cst_43 = arith.constant 9.99999974E-6 : f32
    %128 = vector.broadcast %cst_43 : f32 to vector<16x1xf32>
    %129 = arith.addf %127, %128 : vector<16x1xf32>
    %130 = math.rsqrt %129 : vector<16x1xf32>
    %131 = vector.broadcast %130 : vector<16x1xf32> to vector<16x32xf32>
    %132 = arith.mulf %122, %131 : vector<16x32xf32>
    %c0_44 = arith.constant 0 : index
    %c0_45 = arith.constant 0 : index
    %133 = vector.load %arg6[%c0_44, %c0_45] : memref<1x32xf32, #tpu.memory_space<vmem>>, vector<1x32xf32>
    %134 = vector.broadcast %133 : vector<1x32xf32> to vector<16x32xf32>
    %135 = arith.mulf %132, %134 : vector<16x32xf32>
    %c0_46 = arith.constant 0 : index
    %c0_47 = arith.constant 0 : index
    %136 = vector.load %arg7[%c0_46, %c0_47] : memref<1x32xf32, #tpu.memory_space<vmem>>, vector<1x32xf32>
    %137 = vector.broadcast %136 : vector<1x32xf32> to vector<16x32xf32>
    %138 = arith.addf %135, %137 : vector<16x32xf32>
    %139 = vector.shape_cast %138 : vector<16x32xf32> to vector<2x8x32xf32>
    %c0_48 = arith.constant 0 : index
    %c0_49 = arith.constant 0 : index
    %c0_50 = arith.constant 0 : index
    %140 = vector.load %arg8[%c0_48, %c0_49, %c0_50] : memref<2x8x32xf32, #tpu.memory_space<vmem>>, vector<2x8x32xf32>
    tpu.vector_store %arg8[%c0_48, %c0_49, %c0_50], %139 {strides = array<i32>} : memref<2x8x32xf32, #tpu.memory_space<vmem>>, vector<2x8x32xf32>,
    return
  }
  func.func @transform_0(%arg0: i32) -> (i32, i32, i32) {
    %c0_i32 = arith.constant 0 : i32
    %c0_i32_0 = arith.constant 0 : i32
    %c0_i32_1 = arith.constant 0 : i32
    %c0_i32_2 = arith.constant 0 : i32
    return %c0_i32, %c0_i32_0, %c0_i32_1 : i32, i32, i32
  }
  func.func @transform_1(%arg0: i32) -> (i32, i32) {
    %c0_i32 = arith.constant 0 : i32
    %c0_i32_0 = arith.constant 0 : i32
    %c0_i32_1 = arith.constant 0 : i32
    return %c0_i32, %c0_i32_0 : i32, i32
  }
  func.func @transform_2(%arg0: i32) -> (i32, i32) {
    %c0_i32 = arith.constant 0 : i32
    %c0_i32_0 = arith.constant 0 : i32
    %c0_i32_1 = arith.constant 0 : i32
    return %c0_i32, %c0_i32_0 : i32, i32
  }
  func.func @transform_3(%arg0: i32) -> (i32, i32) {
    %c0_i32 = arith.constant 0 : i32
    %c0_i32_0 = arith.constant 0 : i32
    %c0_i32_1 = arith.constant 0 : i32
    return %c0_i32, %c0_i32_0 : i32, i32
  }
  func.func @transform_4(%arg0: i32) -> (i32, i32) {
    %c0_i32 = arith.constant 0 : i32
    %c0_i32_0 = arith.constant 0 : i32
    %c0_i32_1 = arith.constant 0 : i32
    return %c0_i32, %c0_i32_0 : i32, i32
  }
  func.func @transform_5(%arg0: i32) -> (i32, i32) {
    %c0_i32 = arith.constant 0 : i32
    %c0_i32_0 = arith.constant 0 : i32
    %c0_i32_1 = arith.constant 0 : i32
    return %c0_i32, %c0_i32_0 : i32, i32
  }
  func.func @transform_6(%arg0: i32) -> (i32, i32) {
    %c0_i32 = arith.constant 0 : i32
    %c0_i32_0 = arith.constant 0 : i32
    %c0_i32_1 = arith.constant 0 : i32
    return %c0_i32, %c0_i32_0 : i32, i32
  }
  func.func @transform_7(%arg0: i32) -> (i32, i32, i32) {
    %c0_i32 = arith.constant 0 : i32
    %c0_i32_0 = arith.constant 0 : i32
    %c0_i32_1 = arith.constant 0 : i32
    %c0_i32_2 = arith.constant 0 : i32
    return %c0_i32, %c0_i32_0, %c0_i32_1 : i32, i32, i32
  }
  func.func @transform_8(%arg0: i32) -> (i32, i32, i32, i32) {
    %c0_i32 = arith.constant 0 : i32
    %c0_i32_0 = arith.constant 0 : i32
    %c0_i32_1 = arith.constant 0 : i32
    %c0_i32_2 = arith.constant 0 : i32
    %c0_i32_3 = arith.constant 0 : i32
    return %c0_i32, %c0_i32_0, %c0_i32_1, %c0_i32_2 : i32, i32, i32, i32
  }
}

</mosaic_0001>

<llo_original>
// kernel: tpu_custom_call.1
$region0: #{tpu_custom_call.1}
  #allocation0 [shape = 'u32[]', space=smem, size = 0x4, offset = 0x4, fixed_abs, tag = 'smem constant byte address 0x4 - core index']
  #allocation1 [shape = 'u32[144,128]{1,0:T(1,128)}', space=vmem, size = 0x12000, scoped, tag = 'internal scratch']
  %s0 = inlined_call_operand.hbm [shape: f32[2,8,32], index: 0, kind: input, shape index: {}]
  %s1 = inlined_call_operand.hbm [shape: f32[32,96], index: 1, kind: input, shape index: {}]
  %s2 = inlined_call_operand.vmem [shape: f32[1,96], index: 2, kind: input, shape index: {}]
  %s3 = inlined_call_operand.hbm [shape: f32[32,32], index: 3, kind: input, shape index: {}]
  %s4 = inlined_call_operand.vmem [shape: f32[1,32], index: 4, kind: input, shape index: {}]
  %s5 = inlined_call_operand.vmem [shape: f32[1,32], index: 5, kind: input, shape index: {}]
  %s6 = inlined_call_operand.vmem [shape: f32[1,32], index: 6, kind: input, shape index: {}]
  %s7 = inlined_call_operand.hbm [shape: f32[2,8,32], index: 7, kind: output, shape index: {0}]
  %s8 = inlined_call_operand.hbm [shape: f32[2,4,8,8], index: 8, kind: output, shape index: {1}]
  %9 = xla_tuple %s7, %s8
  %s10 = sld [smem:[#allocation0]]
  $region58: #{tpu_custom_call.1} parent=0
    _
  %s12 = ssub.s32 1, %s10
  %s13 = scalar_select 0, %s12, %s10
  $region1: #{tpu_custom_call.1} parent=0
    #allocation2 [shape = 'u8[8192]{0}', space=vmem, size = 0x2000, scoped, tag = 'input window, operand 0, single buffered']
    #allocation3 [shape = 's32[1]{0}', space=sflag, size = 0x4, scoped, tag = 'scoped memory for tpu_custom_call.1']
    #allocation4 [shape = 's32[1]{0}', space=sflag, size = 0x4, scoped, tag = 'scoped memory for tpu_custom_call.1']
    #allocation5 [shape = 'u8[16384]{0}', space=vmem, size = 0x4000, scoped, tag = 'input window, operand 1, single buffered']
    #allocation6 [shape = 's32[1]{0}', space=sflag, size = 0x4, scoped, tag = 'scoped memory for tpu_custom_call.1']
    #allocation7 [shape = 'u8[16384]{0}', space=vmem, size = 0x4000, scoped, tag = 'input window, operand 3, single buffered']
    #allocation8 [shape = 'u8[8192]{0}', space=vmem, size = 0x2000, scoped, tag = 'output window, operand 0, single buffered']
    #allocation9 [shape = 'u8[32768]{0}', space=vmem, size = 0x8000, scoped, tag = 'output window, operand 1, single buffered']
    #allocation10 [shape = 's32[1]{0}', space=sflag, size = 0x4, scoped, tag = 'scoped memory for tpu_custom_call.1']
    %14 = vsyncpa [#allocation3], 0
    %15 = vsyncpa [#allocation6], 0
    %16 = vsyncpa [#allocation4], 0
    %17 = vsyncpa [#allocation10], 0
    // Predicated region
    $region2: #{tpu_custom_call.1} parent=1 // pred_check
      _
    $region3: #{tpu_custom_call.1} parent=1 // pred_check_branch
      %19 = sbr.rel (0) target = $region5
    $region4: #{tpu_custom_call.1} parent=1 // pred_region
      %s21 = ssub.s32 256, 256
      %22 = vsyncadd [#allocation3], %s21
      %s23 = sshll.u32 [#allocation2], 4
      %s24 = int_to_ptr.vmem [resolvable:$true] %s23
      %29 = dma.hbm_to_vmem [thread:$0]  %s0, 256, %s24, [#allocation3], 128, 128, 8
    $region5: #{tpu_custom_call.1} parent=1 // pred_fallthru
      _
    // Predicated region
    $region6: #{tpu_custom_call.1} parent=1 // pred_check
      _
    $region7: #{tpu_custom_call.1} parent=1 // pred_check_branch
      %31 = sbr.rel (0) target = $region9
    $region8: #{tpu_custom_call.1} parent=1 // pred_region
      %s33 = ssub.s32 512, 512
      %34 = vsyncadd [#allocation6], %s33
      %s35 = sshll.u32 [#allocation5], 4
      %s36 = int_to_ptr.vmem [resolvable:$true] %s35
      %41 = dma.hbm_to_vmem [thread:$0]  %s1, 512, %s36, [#allocation6], 128, 128, 8
    $region9: #{tpu_custom_call.1} parent=1 // pred_fallthru
      _
    // Predicated region
    $region10: #{tpu_custom_call.1} parent=1 // pred_check
      _
    $region11: #{tpu_custom_call.1} parent=1 // pred_check_branch
      %43 = sbr.rel (0) target = $region13
    $region12: #{tpu_custom_call.1} parent=1 // pred_region
      _
    $region13: #{tpu_custom_call.1} parent=1 // pred_fallthru
      _
    // Predicated region
    $region14: #{tpu_custom_call.1} parent=1 // pred_check
      _
    $region15: #{tpu_custom_call.1} parent=1 // pred_check_branch
      %45 = sbr.rel (0) target = $region17
    $region16: #{tpu_custom_call.1} parent=1 // pred_region
      %s47 = ssub.s32 512, 512
      %48 = vsyncadd [#allocation6], %s47
      %s49 = sshll.u32 [#allocation7], 4
      %s50 = int_to_ptr.vmem [resolvable:$true] %s49
      %55 = dma.hbm_to_vmem [thread:$0]  %s3, 512, %s50, [#allocation6], 128, 128, 8
    $region17: #{tpu_custom_call.1} parent=1 // pred_fallthru
      _
    // Predicated region
    $region18: #{tpu_custom_call.1} parent=1 // pred_check
      _
    $region19: #{tpu_custom_call.1} parent=1 // pred_check_branch
      %57 = sbr.rel (0) target = $region21
    $region20: #{tpu_custom_call.1} parent=1 // pred_region
      _
    $region21: #{tpu_custom_call.1} parent=1 // pred_fallthru
      _
    // Predicated region
    $region22: #{tpu_custom_call.1} parent=1 // pred_check
      _
    $region23: #{tpu_custom_call.1} parent=1 // pred_check_branch
      %59 = sbr.rel (0) target = $region25
    $region24: #{tpu_custom_call.1} parent=1 // pred_region
      _
    $region25: #{tpu_custom_call.1} parent=1 // pred_fallthru
      _
    // Predicated region
    $region26: #{tpu_custom_call.1} parent=1 // pred_check
      _
    $region27: #{tpu_custom_call.1} parent=1 // pred_check_branch
      %61 = sbr.rel (0) target = $region29
    $region28: #{tpu_custom_call.1} parent=1 // pred_region
      _
    $region29: #{tpu_custom_call.1} parent=1 // pred_fallthru
      _
    // Predicated region
    $region30: #{tpu_custom_call.1} parent=1 // pred_check
      _
    $region31: #{tpu_custom_call.1} parent=1 // pred_check_branch
      %63 = sbr.rel (0) target = $region33
    $region32: #{tpu_custom_call.1} parent=1 // pred_region
      %64 = dma.done [#allocation3], 256
    $region33: #{tpu_custom_call.1} parent=1 // pred_fallthru
      _
    // Predicated region
    $region34: #{tpu_custom_call.1} parent=1 // pred_check
      _
    $region35: #{tpu_custom_call.1} parent=1 // pred_check_branch
      %66 = sbr.rel (0) target = $region37
    $region36: #{tpu_custom_call.1} parent=1 // pred_region
      %67 = dma.done [#allocation6], 512
    $region37: #{tpu_custom_call.1} parent=1 // pred_fallthru
      _
    // Predicated region
    $region38: #{tpu_custom_call.1} parent=1 // pred_check
      _
    $region39: #{tpu_custom_call.1} parent=1 // pred_check_branch
      %69 = sbr.rel (0) target = $region41
    $region40: #{tpu_custom_call.1} parent=1 // pred_region
      %70 = dma.done [#allocation6], 512
    $region41: #{tpu_custom_call.1} parent=1 // pred_fallthru
      _
    %v71 = vld [vmem:[#allocation2] sm:$0xff]
    %v72 = vld [vmem:[#allocation2 + $0x8] sm:$0xff]
    %v73 = vld [vmem:[#allocation5] sm:$0xff]
    %v74 = vld [vmem:[#allocation5 + $0x8] sm:$0xff]
    %v75 = vld [vmem:[#allocation5 + $0x10] sm:$0xff]
    %v76 = vld [vmem:[#allocation5 + $0x18] sm:$0xff]
    %v77 = vld [vmem:[%s2] sm:$0x1]
    %v79 = vlaneseq
    %v80 = vshrl.u32 %v79, 7
    %v81 = vsub.s32 0, %v80
    %v82 = vrot.slane %v77, %v81
    %vm84 = vcmask 261120
    %v86 = vsel %vm84, %v71, 0
    %v89 = vsel %vm84, %v72, 0
    %91 = vmatprep.subr.mxu0 0.0
    %92 = vmatpush1.msra.mxu0 %v73
    %93 = vmatprep.subr.mxu0 0.0
    %94 = vmatpush1.msra.mxu0 %v74
    %95 = vmatprep.subr.mxu0 0.0
    %96 = vmatpush1.msra.mxu0 %v75
    %97 = vmatprep.subr.mxu0 0.0
    %98 = vmatpush1.msra.mxu0 %v76
    %99 = vmatprep.subr.mxu0 0.0
    %100 = vmatpush1.msra.mxu0 0.0
    %101 = vmatprep.subr.mxu0 0.0
    %102 = vmatpush1.msra.mxu0 0.0
    %103 = vmatprep.subr.mxu0 0.0
    %104 = vmatpush1.msra.mxu0 0.0
    %105 = vmatprep.subr.mxu0 0.0
    %106 = vmatpush1.msra.mxu0 0.0
    %107 = vmatprep.subr.mxu0 0.0
    %108 = vmatpush1.msra.mxu0 0.0
    %109 = vmatprep.subr.mxu0 0.0
    %110 = vmatpush1.msra.mxu0 0.0
    %111 = vmatprep.subr.mxu0 0.0
    %112 = vmatpush1.msra.mxu0 0.0
    %113 = vmatprep.subr.mxu0 0.0
    %114 = vmatpush1.msra.mxu0 0.0
    %115 = vmatprep.subr.mxu0 0.0
    %116 = vmatpush1.msra.mxu0 0.0
    %117 = vmatprep.subr.mxu0 0.0
    %118 = vmatpush1.msra.mxu0 0.0
    %119 = vmatprep.subr.mxu0 0.0
    %120 = vmatpush1.msra.mxu0 0.0
    %121 = vmatprep.subr.mxu0 0.0
    %122 = vmatpush1.msra.mxu0 0.0
    %123 = vmatprep.subr.mxu0 0.0
    %124 = vmatpush1.msra.mxu0 0.0
    %125 = vmatprep.subr.mxu0 0.0
    %126 = vmatpush1.msra.mxu0 0.0
    %127 = vmatprep.subr.mxu0 0.0
    %128 = vmatpush1.msra.mxu0 0.0
    %129 = vmatprep.subr.mxu0 0.0
    %130 = vmatpush1.msra.mxu0 0.0
    %131 = vmatprep.subr.mxu0 0.0
    %132 = vmatpush1.msra.mxu0 0.0
    %133 = vmatprep.subr.mxu0 0.0
    %134 = vmatpush1.msra.mxu0 0.0
    %135 = vmatprep.subr.mxu0 0.0
    %136 = vmatpush1.msra.mxu0 0.0
    %137 = vmatprep.subr.mxu0 0.0
    %138 = vmatpush1.msra.mxu0 0.0
    %139 = vmatprep.subr.mxu0 0.0
    %140 = vmatpush1.msra.mxu0 0.0
    %141 = vmatprep.subr.mxu0 0.0
    %142 = vmatpush1.msra.mxu0 0.0
    %143 = vmatprep.subr.mxu0 0.0
    %144 = vmatpush1.msra.mxu0 0.0
    %145 = vmatprep.subr.mxu0 0.0
    %146 = vmatpush1.msra.mxu0 0.0
    %147 = vmatprep.subr.mxu0 0.0
    %148 = vmatpush1.msra.mxu0 0.0
    %149 = vmatprep.subr.mxu0 0.0
    %150 = vmatpush1.msra.mxu0 0.0
    %151 = vmatprep.subr.mxu0 0.0
    %152 = vmatpush1.msra.mxu0 0.0
    %153 = vmatprep.subr.mxu0 0.0
    %154 = vmatpush1.msra.mxu0 0.0
    %155 = vmatprep.mubr.f32.mxu0 0.0
    %156 = vmatmul.mubr.f32.gmra.mrb[0].mxu0 %v86
    %v157 = vpop.f32.mrb[0].mxu0
    %v158 = vadd.f32 %v82, %v157
    %v159 = vpop.f32.mrb[0].mxu0
    %160 = vmatprep.mubr.f32.mxu0 0.0
    %161 = vmatmul.mubr.f32.gmra.mrb[0].mxu0 %v89
    %v162 = vpop.f32.mrb[0].mxu0
    %v163 = vadd.f32 %v82, %v162
    %v164 = vpop.f32.mrb[0].mxu0
    %165 = vdwg.mxu0
    %v166 = vmul.f32 %v158, 0.17677669
    %v167 = vmul.f32 %v163, 0.17677669
    %169 = vrot.lane.b32.xlu0 %v158, 96
    %v170 = vpop.permute.xlu0 %169
    %vm171 = vcmask 64512
    %v173 = vsel %vm171, %v166, 0
    %v175 = vsel %vm171, %v170, 0
    %177 = vmatprep.subr.mxu0 0.0
    %178 = vmatpush1.xpose.msra.mxu0 %v175
    %179 = vmatprep.subr.mxu0 0.0
    %180 = vmatpush1.xpose.msra.mxu0 0.0
    %181 = vmatprep.subr.mxu0 0.0
    %182 = vmatpush1.xpose.msra.mxu0 0.0
    %183 = vmatprep.subr.mxu0 0.0
    %184 = vmatpush1.xpose.msra.mxu0 0.0
    %185 = vmatprep.subr.mxu0 0.0
    %186 = vmatpush1.xpose.msra.mxu0 0.0
    %187 = vmatprep.subr.mxu0 0.0
    %188 = vmatpush1.xpose.msra.mxu0 0.0
    %189 = vmatprep.subr.mxu0 0.0
    %190 = vmatpush1.xpose.msra.mxu0 0.0
    %191 = vmatprep.subr.mxu0 0.0
    %192 = vmatpush1.xpose.msra.mxu0 0.0
    %193 = vmatprep.subr.mxu0 0.0
    %194 = vmatpush1.xpose.msra.mxu0 0.0
    %195 = vmatprep.subr.mxu0 0.0
    %196 = vmatpush1.xpose.msra.mxu0 0.0
    %197 = vmatprep.subr.mxu0 0.0
    %198 = vmatpush1.xpose.msra.mxu0 0.0
    %199 = vmatprep.subr.mxu0 0.0
    %200 = vmatpush1.xpose.msra.mxu0 0.0
    %201 = vmatprep.subr.mxu0 0.0
    %202 = vmatpush1.xpose.msra.mxu0 0.0
    %203 = vmatprep.subr.mxu0 0.0
    %204 = vmatpush1.xpose.msra.mxu0 0.0
    %205 = vmatprep.subr.mxu0 0.0
    %206 = vmatpush1.xpose.msra.mxu0 0.0
    %207 = vmatprep.subr.mxu0 0.0
    %208 = vmatpush1.xpose.msra.mxu0 0.0
    %209 = vmatprep.subr.mxu0 0.0
    %210 = vmatpush1.xpose.msra.mxu0 0.0
    %211 = vmatprep.subr.mxu0 0.0
    %212 = vmatpush1.xpose.msra.mxu0 0.0
    %213 = vmatprep.subr.mxu0 0.0
    %214 = vmatpush1.xpose.msra.mxu0 0.0
    %215 = vmatprep.subr.mxu0 0.0
    %216 = vmatpush1.xpose.msra.mxu0 0.0
    %217 = vmatprep.subr.mxu0 0.0
    %218 = vmatpush1.xpose.msra.mxu0 0.0
    %219 = vmatprep.subr.mxu0 0.0
    %220 = vmatpush1.xpose.msra.mxu0 0.0
    %221 = vmatprep.subr.mxu0 0.0
    %222 = vmatpush1.xpose.msra.mxu0 0.0
    %223 = vmatprep.subr.mxu0 0.0
    %224 = vmatpush1.xpose.msra.mxu0 0.0
    %225 = vmatprep.subr.mxu0 0.0
    %226 = vmatpush1.xpose.msra.mxu0 0.0
    %227 = vmatprep.subr.mxu0 0.0
    %228 = vmatpush1.xpose.msra.mxu0 0.0
    %229 = vmatprep.subr.mxu0 0.0
    %230 = vmatpush1.xpose.msra.mxu0 0.0
    %231 = vmatprep.subr.mxu0 0.0
    %232 = vmatpush1.xpose.msra.mxu0 0.0
    %233 = vmatprep.subr.mxu0 0.0
    %234 = vmatpush1.xpose.msra.mxu0 0.0
    %235 = vmatprep.subr.mxu0 0.0
    %236 = vmatpush1.xpose.msra.mxu0 0.0
    %237 = vmatprep.subr.mxu0 0.0
    %238 = vmatpush1.xpose.msra.mxu0 0.0
    %239 = vmatprep.subr.mxu0 0.0
    %240 = vmatpush1.xpose.msra.mxu0 0.0
    %241 = vmatprep.mubr.f32.mxu0 0.0
    %242 = vmatmul.mubr.f32.gmra.mrb[0].mxu0 %v173
    %v243 = vpop.f32.mrb[0].mxu0
    %v244 = vadd.f32 0.0, %v243
    %v245 = vpop.f32.mrb[0].mxu0
    %246 = vdwg.mxu0
    %248 = vrot.lane.b32.xlu0 %v163, 96
    %v249 = vpop.permute.xlu0 %248
    %v251 = vsel %vm171, %v167, 0
    %v253 = vsel %vm171, %v249, 0
    %255 = vmatprep.subr.mxu0 0.0
    %256 = vmatpush1.xpose.msra.mxu0 %v253
    %257 = vmatprep.subr.mxu0 0.0
    %258 = vmatpush1.xpose.msra.mxu0 0.0
    %259 = vmatprep.subr.mxu0 0.0
    %260 = vmatpush1.xpose.msra.mxu0 0.0
    %261 = vmatprep.subr.mxu0 0.0
    %262 = vmatpush1.xpose.msra.mxu0 0.0
    %263 = vmatprep.subr.mxu0 0.0
    %264 = vmatpush1.xpose.msra.mxu0 0.0
    %265 = vmatprep.subr.mxu0 0.0
    %266 = vmatpush1.xpose.msra.mxu0 0.0
    %267 = vmatprep.subr.mxu0 0.0
    %268 = vmatpush1.xpose.msra.mxu0 0.0
    %269 = vmatprep.subr.mxu0 0.0
    %270 = vmatpush1.xpose.msra.mxu0 0.0
    %271 = vmatprep.subr.mxu0 0.0
    %272 = vmatpush1.xpose.msra.mxu0 0.0
    %273 = vmatprep.subr.mxu0 0.0
    %274 = vmatpush1.xpose.msra.mxu0 0.0
    %275 = vmatprep.subr.mxu0 0.0
    %276 = vmatpush1.xpose.msra.mxu0 0.0
    %277 = vmatprep.subr.mxu0 0.0
    %278 = vmatpush1.xpose.msra.mxu0 0.0
    %279 = vmatprep.subr.mxu0 0.0
    %280 = vmatpush1.xpose.msra.mxu0 0.0
    %281 = vmatprep.subr.mxu0 0.0
    %282 = vmatpush1.xpose.msra.mxu0 0.0
    %283 = vmatprep.subr.mxu0 0.0
    %284 = vmatpush1.xpose.msra.mxu0 0.0
    %285 = vmatprep.subr.mxu0 0.0
    %286 = vmatpush1.xpose.msra.mxu0 0.0
    %287 = vmatprep.subr.mxu0 0.0
    %288 = vmatpush1.xpose.msra.mxu0 0.0
    %289 = vmatprep.subr.mxu0 0.0
    %290 = vmatpush1.xpose.msra.mxu0 0.0
    %291 = vmatprep.subr.mxu0 0.0
    %292 = vmatpush1.xpose.msra.mxu0 0.0
    %293 = vmatprep.subr.mxu0 0.0
    %294 = vmatpush1.xpose.msra.mxu0 0.0
    %295 = vmatprep.subr.mxu0 0.0
    %296 = vmatpush1.xpose.msra.mxu0 0.0
    %297 = vmatprep.subr.mxu0 0.0
    %298 = vmatpush1.xpose.msra.mxu0 0.0
    %299 = vmatprep.subr.mxu0 0.0
    %300 = vmatpush1.xpose.msra.mxu0 0.0
    %301 = vmatprep.subr.mxu0 0.0
    %302 = vmatpush1.xpose.msra.mxu0 0.0
    %303 = vmatprep.subr.mxu0 0.0
    %304 = vmatpush1.xpose.msra.mxu0 0.0
    %305 = vmatprep.subr.mxu0 0.0
    %306 = vmatpush1.xpose.msra.mxu0 0.0
    %307 = vmatprep.subr.mxu0 0.0
    %308 = vmatpush1.xpose.msra.mxu0 0.0
    %309 = vmatprep.subr.mxu0 0.0
    %310 = vmatpush1.xpose.msra.mxu0 0.0
    %311 = vmatprep.subr.mxu0 0.0
    %312 = vmatpush1.xpose.msra.mxu0 0.0
    %313 = vmatprep.subr.mxu0 0.0
    %314 = vmatpush1.xpose.msra.mxu0 0.0
    %315 = vmatprep.subr.mxu0 0.0
    %316 = vmatpush1.xpose.msra.mxu0 0.0
    %317 = vmatprep.subr.mxu0 0.0
    %318 = vmatpush1.xpose.msra.mxu0 0.0
    %319 = vmatprep.mubr.f32.mxu0 0.0
    %320 = vmatmul.mubr.f32.gmra.mrb[0].mxu0 %v251
    %v321 = vpop.f32.mrb[0].mxu0
    %v322 = vadd.f32 0.0, %v321
    %v323 = vpop.f32.mrb[0].mxu0
    %324 = vdwg.mxu0
    %v325 = vsel %vm171, %v244, -inf
    %326 = vmax.xlane.f32.xlu0 %v325
    %v327 = vpop.xlane.xlu0 %326
    %v328 = vsel %vm171, %v322, -inf
    %329 = vmax.xlane.f32.xlu0 %v328
    %v330 = vpop.xlane.xlu0 %329
    %v331 = vsub.f32 %v244, %v327
    %v332 = vsub.f32 %v322, %v330
    %v333 = vmul.f32 %v331, 1.442695
    %v334 = vpow.pop %v333
    %v335 = vmul.f32 %v332, 1.442695
    %v336 = vpow.pop %v335
    %v337 = vsel %vm171, %v334, 0.0
    %338 = vadd.xlane.f32.xlu0 %v337
    %v339 = vpop.xlane.xlu0 %338
    %v340 = vsel %vm171, %v336, 0.0
    %341 = vadd.xlane.f32.xlu0 %v340
    %v342 = vpop.xlane.xlu0 %341
    %v343 = vrcp.pop %v339
    %v344 = vrcp.pop %v342
    %v345 = vmul.f32 %v339, %v343
    %v346 = vmul.f32 %v342, %v344
    %v347 = vsub.f32 2.0, %v345
    %v348 = vsub.f32 2.0, %v346
    %v349 = vmul.f32 %v343, %v347
    %v350 = vmul.f32 %v344, %v348
    %v351 = vmul.f32 %v334, %v349
    %v352 = vmul.f32 %v336, %v350
    %353 = vrot.lane.b32.xlu0 %v158, 64
    %v354 = vpop.permute.xlu0 %353
    %v357 = vsel %vm171, %v351, 0
    %359 = vmatprep.subr.mxu0 0.0
    %360 = vmatpush1.msra.mxu0 %v354
    %361 = vmatprep.subr.mxu0 0.0
    %362 = vmatpush1.msra.mxu0 0.0
    %363 = vmatprep.subr.mxu0 0.0
    %364 = vmatpush1.msra.mxu0 0.0
    %365 = vmatprep.subr.mxu0 0.0
    %366 = vmatpush1.msra.mxu0 0.0
    %367 = vmatprep.subr.mxu0 0.0
    %368 = vmatpush1.msra.mxu0 0.0
    %369 = vmatprep.subr.mxu0 0.0
    %370 = vmatpush1.msra.mxu0 0.0
    %371 = vmatprep.subr.mxu0 0.0
    %372 = vmatpush1.msra.mxu0 0.0
    %373 = vmatprep.subr.mxu0 0.0
    %374 = vmatpush1.msra.mxu0 0.0
    %375 = vmatprep.subr.mxu0 0.0
    %376 = vmatpush1.msra.mxu0 0.0
    %377 = vmatprep.subr.mxu0 0.0
    %378 = vmatpush1.msra.mxu0 0.0
    %379 = vmatprep.subr.mxu0 0.0
    %380 = vmatpush1.msra.mxu0 0.0
    %381 = vmatprep.subr.mxu0 0.0
    %382 = vmatpush1.msra.mxu0 0.0
    %383 = vmatprep.subr.mxu0 0.0
    %384 = vmatpush1.msra.mxu0 0.0
    %385 = vmatprep.subr.mxu0 0.0
    %386 = vmatpush1.msra.mxu0 0.0
    %387 = vmatprep.subr.mxu0 0.0
    %388 = vmatpush1.msra.mxu0 0.0
    %389 = vmatprep.subr.mxu0 0.0
    %390 = vmatpush1.msra.mxu0 0.0
    %391 = vmatprep.subr.mxu0 0.0
    %392 = vmatpush1.msra.mxu0 0.0
    %393 = vmatprep.subr.mxu0 0.0
    %394 = vmatpush1.msra.mxu0 0.0
    %395 = vmatprep.subr.mxu0 0.0
    %396 = vmatpush1.msra.mxu0 0.0
    %397 = vmatprep.subr.mxu0 0.0
    %398 = vmatpush1.msra.mxu0 0.0
    %399 = vmatprep.subr.mxu0 0.0
    %400 = vmatpush1.msra.mxu0 0.0
    %401 = vmatprep.subr.mxu0 0.0
    %402 = vmatpush1.msra.mxu0 0.0
    %403 = vmatprep.subr.mxu0 0.0
    %404 = vmatpush1.msra.mxu0 0.0
    %405 = vmatprep.subr.mxu0 0.0
    %406 = vmatpush1.msra.mxu0 0.0
    %407 = vmatprep.subr.mxu0 0.0
    %408 = vmatpush1.msra.mxu0 0.0
    %409 = vmatprep.subr.mxu0 0.0
    %410 = vmatpush1.msra.mxu0 0.0
    %411 = vmatprep.subr.mxu0 0.0
    %412 = vmatpush1.msra.mxu0 0.0
    %413 = vmatprep.subr.mxu0 0.0
    %414 = vmatpush1.msra.mxu0 0.0
    %415 = vmatprep.subr.mxu0 0.0
    %416 = vmatpush1.msra.mxu0 0.0
    %417 = vmatprep.subr.mxu0 0.0
    %418 = vmatpush1.msra.mxu0 0.0
    %419 = vmatprep.subr.mxu0 0.0
    %420 = vmatpush1.msra.mxu0 0.0
    %421 = vmatprep.subr.mxu0 0.0
    %422 = vmatpush1.msra.mxu0 0.0
    %423 = vmatprep.mubr.f32.mxu0 0.0
    %424 = vmatmul.mubr.f32.gmra.mrb[0].mxu0 %v357
    %v425 = vpop.f32.mrb[0].mxu0
    %v426 = vadd.f32 0.0, %v425
    %v427 = vpop.f32.mrb[0].mxu0
    %428 = vdwg.mxu0
    %429 = vrot.lane.b32.xlu0 %v163, 64
    %v430 = vpop.permute.xlu0 %429
    %v433 = vsel %vm171, %v352, 0
    %435 = vmatprep.subr.mxu0 0.0
    %436 = vmatpush1.msra.mxu0 %v430
    %437 = vmatprep.subr.mxu0 0.0
    %438 = vmatpush1.msra.mxu0 0.0
    %439 = vmatprep.subr.mxu0 0.0
    %440 = vmatpush1.msra.mxu0 0.0
    %441 = vmatprep.subr.mxu0 0.0
    %442 = vmatpush1.msra.mxu0 0.0
    %443 = vmatprep.subr.mxu0 0.0
    %444 = vmatpush1.msra.mxu0 0.0
    %445 = vmatprep.subr.mxu0 0.0
    %446 = vmatpush1.msra.mxu0 0.0
    %447 = vmatprep.subr.mxu0 0.0
    %448 = vmatpush1.msra.mxu0 0.0
    %449 = vmatprep.subr.mxu0 0.0
    %450 = vmatpush1.msra.mxu0 0.0
    %451 = vmatprep.subr.mxu0 0.0
    %452 = vmatpush1.msra.mxu0 0.0
    %453 = vmatprep.subr.mxu0 0.0
    %454 = vmatpush1.msra.mxu0 0.0
    %455 = vmatprep.subr.mxu0 0.0
    %456 = vmatpush1.msra.mxu0 0.0
    %457 = vmatprep.subr.mxu0 0.0
    %458 = vmatpush1.msra.mxu0 0.0
    %459 = vmatprep.subr.mxu0 0.0
    %460 = vmatpush1.msra.mxu0 0.0
    %461 = vmatprep.subr.mxu0 0.0
    %462 = vmatpush1.msra.mxu0 0.0
    %463 = vmatprep.subr.mxu0 0.0
    %464 = vmatpush1.msra.mxu0 0.0
    %465 = vmatprep.subr.mxu0 0.0
    %466 = vmatpush1.msra.mxu0 0.0
    %467 = vmatprep.subr.mxu0 0.0
    %468 = vmatpush1.msra.mxu0 0.0
    %469 = vmatprep.subr.mxu0 0.0
    %470 = vmatpush1.msra.mxu0 0.0
    %471 = vmatprep.subr.mxu0 0.0
    %472 = vmatpush1.msra.mxu0 0.0
    %473 = vmatprep.subr.mxu0 0.0
    %474 = vmatpush1.msra.mxu0 0.0
    %475 = vmatprep.subr.mxu0 0.0
    %476 = vmatpush1.msra.mxu0 0.0
    %477 = vmatprep.subr.mxu0 0.0
    %478 = vmatpush1.msra.mxu0 0.0
    %479 = vmatprep.subr.mxu0 0.0
    %480 = vmatpush1.msra.mxu0 0.0
    %481 = vmatprep.subr.mxu0 0.0
    %482 = vmatpush1.msra.mxu0 0.0
    %483 = vmatprep.subr.mxu0 0.0
    %484 = vmatpush1.msra.mxu0 0.0
    %485 = vmatprep.subr.mxu0 0.0
    %486 = vmatpush1.msra.mxu0 0.0
    %487 = vmatprep.subr.mxu0 0.0
    %488 = vmatpush1.msra.mxu0 0.0
    %489 = vmatprep.subr.mxu0 0.0
    %490 = vmatpush1.msra.mxu0 0.0
    %491 = vmatprep.subr.mxu0 0.0
    %492 = vmatpush1.msra.mxu0 0.0
    %493 = vmatprep.subr.mxu0 0.0
    %494 = vmatpush1.msra.mxu0 0.0
    %495 = vmatprep.subr.mxu0 0.0
    %496 = vmatpush1.msra.mxu0 0.0
    %497 = vmatprep.subr.mxu0 0.0
    %498 = vmatpush1.msra.mxu0 0.0
    %499 = vmatprep.mubr.f32.mxu0 0.0
    %500 = vmatmul.mubr.f32.gmra.mrb[0].mxu0 %v433
    %v501 = vpop.f32.mrb[0].mxu0
    %v502 = vadd.f32 0.0, %v501
    %v503 = vpop.f32.mrb[0].mxu0
    %504 = vdwg.mxu0
    %505 = vrot.lane.b32.xlu0 %v166, 120
    %v506 = vpop.permute.xlu0 %505
    %507 = vrot.lane.b32.xlu0 %v158, 88
    %v508 = vpop.permute.xlu0 %507
    %v509 = vsel %vm171, %v506, 0
    %v511 = vsel %vm171, %v508, 0
    %513 = vmatprep.subr.mxu0 0.0
    %514 = vmatpush1.xpose.msra.mxu0 %v511
    %515 = vmatprep.subr.mxu0 0.0
    %516 = vmatpush1.xpose.msra.mxu0 0.0
    %517 = vmatprep.subr.mxu0 0.0
    %518 = vmatpush1.xpose.msra.mxu0 0.0
    %519 = vmatprep.subr.mxu0 0.0
    %520 = vmatpush1.xpose.msra.mxu0 0.0
    %521 = vmatprep.subr.mxu0 0.0
    %522 = vmatpush1.xpose.msra.mxu0 0.0
    %523 = vmatprep.subr.mxu0 0.0
    %524 = vmatpush1.xpose.msra.mxu0 0.0
    %525 = vmatprep.subr.mxu0 0.0
    %526 = vmatpush1.xpose.msra.mxu0 0.0
    %527 = vmatprep.subr.mxu0 0.0
    %528 = vmatpush1.xpose.msra.mxu0 0.0
    %529 = vmatprep.subr.mxu0 0.0
    %530 = vmatpush1.xpose.msra.mxu0 0.0
    %531 = vmatprep.subr.mxu0 0.0
    %532 = vmatpush1.xpose.msra.mxu0 0.0
    %533 = vmatprep.subr.mxu0 0.0
    %534 = vmatpush1.xpose.msra.mxu0 0.0
    %535 = vmatprep.subr.mxu0 0.0
    %536 = vmatpush1.xpose.msra.mxu0 0.0
    %537 = vmatprep.subr.mxu0 0.0
    %538 = vmatpush1.xpose.msra.mxu0 0.0
    %539 = vmatprep.subr.mxu0 0.0
    %540 = vmatpush1.xpose.msra.mxu0 0.0
    %541 = vmatprep.subr.mxu0 0.0
    %542 = vmatpush1.xpose.msra.mxu0 0.0
    %543 = vmatprep.subr.mxu0 0.0
    %544 = vmatpush1.xpose.msra.mxu0 0.0
    %545 = vmatprep.subr.mxu0 0.0
    %546 = vmatpush1.xpose.msra.mxu0 0.0
    %547 = vmatprep.subr.mxu0 0.0
    %548 = vmatpush1.xpose.msra.mxu0 0.0
    %549 = vmatprep.subr.mxu0 0.0
    %550 = vmatpush1.xpose.msra.mxu0 0.0
    %551 = vmatprep.subr.mxu0 0.0
    %552 = vmatpush1.xpose.msra.mxu0 0.0
    %553 = vmatprep.subr.mxu0 0.0
    %554 = vmatpush1.xpose.msra.mxu0 0.0
    %555 = vmatprep.subr.mxu0 0.0
    %556 = vmatpush1.xpose.msra.mxu0 0.0
    %557 = vmatprep.subr.mxu0 0.0
    %558 = vmatpush1.xpose.msra.mxu0 0.0
    %559 = vmatprep.subr.mxu0 0.0
    %560 = vmatpush1.xpose.msra.mxu0 0.0
    %561 = vmatprep.subr.mxu0 0.0
    %562 = vmatpush1.xpose.msra.mxu0 0.0
    %563 = vmatprep.subr.mxu0 0.0
    %564 = vmatpush1.xpose.msra.mxu0 0.0
    %565 = vmatprep.subr.mxu0 0.0
    %566 = vmatpush1.xpose.msra.mxu0 0.0
    %567 = vmatprep.subr.mxu0 0.0
    %568 = vmatpush1.xpose.msra.mxu0 0.0
    %569 = vmatprep.subr.mxu0 0.0
    %570 = vmatpush1.xpose.msra.mxu0 0.0
    %571 = vmatprep.subr.mxu0 0.0
    %572 = vmatpush1.xpose.msra.mxu0 0.0
    %573 = vmatprep.subr.mxu0 0.0
    %574 = vmatpush1.xpose.msra.mxu0 0.0
    %575 = vmatprep.subr.mxu0 0.0
    %576 = vmatpush1.xpose.msra.mxu0 0.0
    %577 = vmatprep.mubr.f32.mxu0 0.0
    %578 = vmatmul.mubr.f32.gmra.mrb[0].mxu0 %v509
    %v579 = vpop.f32.mrb[0].mxu0
    %v580 = vadd.f32 0.0, %v579
    %v581 = vpop.f32.mrb[0].mxu0
    %582 = vdwg.mxu0
    %583 = vrot.lane.b32.xlu0 %v167, 120
    %v584 = vpop.permute.xlu0 %583
    %585 = vrot.lane.b32.xlu0 %v163, 88
    %v586 = vpop.permute.xlu0 %585
    %v587 = vsel %vm171, %v584, 0
    %v589 = vsel %vm171, %v586, 0
    %591 = vmatprep.subr.mxu0 0.0
    %592 = vmatpush1.xpose.msra.mxu0 %v589
    %593 = vmatprep.subr.mxu0 0.0
    %594 = vmatpush1.xpose.msra.mxu0 0.0
    %595 = vmatprep.subr.mxu0 0.0
    %596 = vmatpush1.xpose.msra.mxu0 0.0
    %597 = vmatprep.subr.mxu0 0.0
    %598 = vmatpush1.xpose.msra.mxu0 0.0
    %599 = vmatprep.subr.mxu0 0.0
    %600 = vmatpush1.xpose.msra.mxu0 0.0
    %601 = vmatprep.subr.mxu0 0.0
    %602 = vmatpush1.xpose.msra.mxu0 0.0
    %603 = vmatprep.subr.mxu0 0.0
    %604 = vmatpush1.xpose.msra.mxu0 0.0
    %605 = vmatprep.subr.mxu0 0.0
    %606 = vmatpush1.xpose.msra.mxu0 0.0
    %607 = vmatprep.subr.mxu0 0.0
    %608 = vmatpush1.xpose.msra.mxu0 0.0
    %609 = vmatprep.subr.mxu0 0.0
    %610 = vmatpush1.xpose.msra.mxu0 0.0
    %611 = vmatprep.subr.mxu0 0.0
    %612 = vmatpush1.xpose.msra.mxu0 0.0
    %613 = vmatprep.subr.mxu0 0.0
    %614 = vmatpush1.xpose.msra.mxu0 0.0
    %615 = vmatprep.subr.mxu0 0.0
    %616 = vmatpush1.xpose.msra.mxu0 0.0
    %617 = vmatprep.subr.mxu0 0.0
    %618 = vmatpush1.xpose.msra.mxu0 0.0
    %619 = vmatprep.subr.mxu0 0.0
    %620 = vmatpush1.xpose.msra.mxu0 0.0
    %621 = vmatprep.subr.mxu0 0.0
    %622 = vmatpush1.xpose.msra.mxu0 0.0
    %623 = vmatprep.subr.mxu0 0.0
    %624 = vmatpush1.xpose.msra.mxu0 0.0
    %625 = vmatprep.subr.mxu0 0.0
    %626 = vmatpush1.xpose.msra.mxu0 0.0
    %627 = vmatprep.subr.mxu0 0.0
    %628 = vmatpush1.xpose.msra.mxu0 0.0
    %629 = vmatprep.subr.mxu0 0.0
    %630 = vmatpush1.xpose.msra.mxu0 0.0
    %631 = vmatprep.subr.mxu0 0.0
    %632 = vmatpush1.xpose.msra.mxu0 0.0
    %633 = vmatprep.subr.mxu0 0.0
    %634 = vmatpush1.xpose.msra.mxu0 0.0
    %635 = vmatprep.subr.mxu0 0.0
    %636 = vmatpush1.xpose.msra.mxu0 0.0
    %637 = vmatprep.subr.mxu0 0.0
    %638 = vmatpush1.xpose.msra.mxu0 0.0
    %639 = vmatprep.subr.mxu0 0.0
    %640 = vmatpush1.xpose.msra.mxu0 0.0
    %641 = vmatprep.subr.mxu0 0.0
    %642 = vmatpush1.xpose.msra.mxu0 0.0
    %643 = vmatprep.subr.mxu0 0.0
    %644 = vmatpush1.xpose.msra.mxu0 0.0
    %645 = vmatprep.subr.mxu0 0.0
    %646 = vmatpush1.xpose.msra.mxu0 0.0
    %647 = vmatprep.subr.mxu0 0.0
    %648 = vmatpush1.xpose.msra.mxu0 0.0
    %649 = vmatprep.subr.mxu0 0.0
    %650 = vmatpush1.xpose.msra.mxu0 0.0
    %651 = vmatprep.subr.mxu0 0.0
    %652 = vmatpush1.xpose.msra.mxu0 0.0
    %653 = vmatprep.subr.mxu0 0.0
    %654 = vmatpush1.xpose.msra.mxu0 0.0
    %655 = vmatprep.mubr.f32.mxu0 0.0
    %656 = vmatmul.mubr.f32.gmra.mrb[0].mxu0 %v587
    %v657 = vpop.f32.mrb[0].mxu0
    %v658 = vadd.f32 0.0, %v657
    %v659 = vpop.f32.mrb[0].mxu0
    %660 = vdwg.mxu0
    %v661 = vsel %vm171, %v580, -inf
    %662 = vmax.xlane.f32.xlu0 %v661
    %v663 = vpop.xlane.xlu0 %662
    %v664 = vsel %vm171, %v658, -inf
    %665 = vmax.xlane.f32.xlu0 %v664
    %v666 = vpop.xlane.xlu0 %665
    %v667 = vsub.f32 %v580, %v663
    %v668 = vsub.f32 %v658, %v666
    %v669 = vmul.f32 %v667, 1.442695
    %v670 = vpow.pop %v669
    %v671 = vmul.f32 %v668, 1.442695
    %v672 = vpow.pop %v671
    %v673 = vsel %vm171, %v670, 0.0
    %674 = vadd.xlane.f32.xlu0 %v673
    %v675 = vpop.xlane.xlu0 %674
    %v676 = vsel %vm171, %v672, 0.0
    %677 = vadd.xlane.f32.xlu0 %v676
    %v678 = vpop.xlane.xlu0 %677
    %v679 = vrcp.pop %v675
    %v680 = vrcp.pop %v678
    %v681 = vmul.f32 %v675, %v679
    %v682 = vmul.f32 %v678, %v680
    %v683 = vsub.f32 2.0, %v681
    %v684 = vsub.f32 2.0, %v682
    %v685 = vmul.f32 %v679, %v683
    %v686 = vmul.f32 %v680, %v684
    %v687 = vmul.f32 %v670, %v685
    %v688 = vmul.f32 %v672, %v686
    %689 = vrot.lane.b32.xlu0 %v158, 56
    %v690 = vpop.permute.xlu0 %689
    %v693 = vsel %vm171, %v687, 0
    %695 = vmatprep.subr.mxu0 0.0
    %696 = vmatpush1.msra.mxu0 %v690
    %697 = vmatprep.subr.mxu0 0.0
    %698 = vmatpush1.msra.mxu0 0.0
    %699 = vmatprep.subr.mxu0 0.0
    %700 = vmatpush1.msra.mxu0 0.0
    %701 = vmatprep.subr.mxu0 0.0
    %702 = vmatpush1.msra.mxu0 0.0
    %703 = vmatprep.subr.mxu0 0.0
    %704 = vmatpush1.msra.mxu0 0.0
    %705 = vmatprep.subr.mxu0 0.0
    %706 = vmatpush1.msra.mxu0 0.0
    %707 = vmatprep.subr.mxu0 0.0
    %708 = vmatpush1.msra.mxu0 0.0
    %709 = vmatprep.subr.mxu0 0.0
    %710 = vmatpush1.msra.mxu0 0.0
    %711 = vmatprep.subr.mxu0 0.0
    %712 = vmatpush1.msra.mxu0 0.0
    %713 = vmatprep.subr.mxu0 0.0
    %714 = vmatpush1.msra.mxu0 0.0
    %715 = vmatprep.subr.mxu0 0.0
    %716 = vmatpush1.msra.mxu0 0.0
    %717 = vmatprep.subr.mxu0 0.0
    %718 = vmatpush1.msra.mxu0 0.0
    %719 = vmatprep.subr.mxu0 0.0
    %720 = vmatpush1.msra.mxu0 0.0
    %721 = vmatprep.subr.mxu0 0.0
    %722 = vmatpush1.msra.mxu0 0.0
    %723 = vmatprep.subr.mxu0 0.0
    %724 = vmatpush1.msra.mxu0 0.0
    %725 = vmatprep.subr.mxu0 0.0
    %726 = vmatpush1.msra.mxu0 0.0
    %727 = vmatprep.subr.mxu0 0.0
    %728 = vmatpush1.msra.mxu0 0.0
    %729 = vmatprep.subr.mxu0 0.0
    %730 = vmatpush1.msra.mxu0 0.0
    %731 = vmatprep.subr.mxu0 0.0
    %732 = vmatpush1.msra.mxu0 0.0
    %733 = vmatprep.subr.mxu0 0.0
    %734 = vmatpush1.msra.mxu0 0.0
    %735 = vmatprep.subr.mxu0 0.0
    %736 = vmatpush1.msra.mxu0 0.0
    %737 = vmatprep.subr.mxu0 0.0
    %738 = vmatpush1.msra.mxu0 0.0
    %739 = vmatprep.subr.mxu0 0.0
    %740 = vmatpush1.msra.mxu0 0.0
    %741 = vmatprep.subr.mxu0 0.0
    %742 = vmatpush1.msra.mxu0 0.0
    %743 = vmatprep.subr.mxu0 0.0
    %744 = vmatpush1.msra.mxu0 0.0
    %745 = vmatprep.subr.mxu0 0.0
    %746 = vmatpush1.msra.mxu0 0.0
    %747 = vmatprep.subr.mxu0 0.0
    %748 = vmatpush1.msra.mxu0 0.0
    %749 = vmatprep.subr.mxu0 0.0
    %750 = vmatpush1.msra.mxu0 0.0
    %751 = vmatprep.subr.mxu0 0.0
    %752 = vmatpush1.msra.mxu0 0.0
    %753 = vmatprep.subr.mxu0 0.0
    %754 = vmatpush1.msra.mxu0 0.0
    %755 = vmatprep.subr.mxu0 0.0
    %756 = vmatpush1.msra.mxu0 0.0
    %757 = vmatprep.subr.mxu0 0.0
    %758 = vmatpush1.msra.mxu0 0.0
    %759 = vmatprep.mubr.f32.mxu0 0.0
    %760 = vmatmul.mubr.f32.gmra.mrb[0].mxu0 %v693
    %v761 = vpop.f32.mrb[0].mxu0
    %v762 = vadd.f32 0.0, %v761
    %v763 = vpop.f32.mrb[0].mxu0
    %764 = vdwg.mxu0
    %765 = vrot.lane.b32.xlu0 %v163, 56
    %v766 = vpop.permute.xlu0 %765
    %v769 = vsel %vm171, %v688, 0
    %771 = vmatprep.subr.mxu0 0.0
    %772 = vmatpush1.msra.mxu0 %v766
    %773 = vmatprep.subr.mxu0 0.0
    %774 = vmatpush1.msra.mxu0 0.0
    %775 = vmatprep.subr.mxu0 0.0
    %776 = vmatpush1.msra.mxu0 0.0
    %777 = vmatprep.subr.mxu0 0.0
    %778 = vmatpush1.msra.mxu0 0.0
    %779 = vmatprep.subr.mxu0 0.0
    %780 = vmatpush1.msra.mxu0 0.0
    %781 = vmatprep.subr.mxu0 0.0
    %782 = vmatpush1.msra.mxu0 0.0
    %783 = vmatprep.subr.mxu0 0.0
    %784 = vmatpush1.msra.mxu0 0.0
    %785 = vmatprep.subr.mxu0 0.0
    %786 = vmatpush1.msra.mxu0 0.0
    %787 = vmatprep.subr.mxu0 0.0
    %788 = vmatpush1.msra.mxu0 0.0
    %789 = vmatprep.subr.mxu0 0.0
    %790 = vmatpush1.msra.mxu0 0.0
    %791 = vmatprep.subr.mxu0 0.0
    %792 = vmatpush1.msra.mxu0 0.0
    %793 = vmatprep.subr.mxu0 0.0
    %794 = vmatpush1.msra.mxu0 0.0
    %795 = vmatprep.subr.mxu0 0.0
    %796 = vmatpush1.msra.mxu0 0.0
    %797 = vmatprep.subr.mxu0 0.0
    %798 = vmatpush1.msra.mxu0 0.0
    %799 = vmatprep.subr.mxu0 0.0
    %800 = vmatpush1.msra.mxu0 0.0
    %801 = vmatprep.subr.mxu0 0.0
    %802 = vmatpush1.msra.mxu0 0.0
    %803 = vmatprep.subr.mxu0 0.0
    %804 = vmatpush1.msra.mxu0 0.0
    %805 = vmatprep.subr.mxu0 0.0
    %806 = vmatpush1.msra.mxu0 0.0
    %807 = vmatprep.subr.mxu0 0.0
    %808 = vmatpush1.msra.mxu0 0.0
    %809 = vmatprep.subr.mxu0 0.0
    %810 = vmatpush1.msra.mxu0 0.0
    %811 = vmatprep.subr.mxu0 0.0
    %812 = vmatpush1.msra.mxu0 0.0
    %813 = vmatprep.subr.mxu0 0.0
    %814 = vmatpush1.msra.mxu0 0.0
    %815 = vmatprep.subr.mxu0 0.0
    %816 = vmatpush1.msra.mxu0 0.0
    %817 = vmatprep.subr.mxu0 0.0
    %818 = vmatpush1.msra.mxu0 0.0
    %819 = vmatprep.subr.mxu0 0.0
    %820 = vmatpush1.msra.mxu0 0.0
    %821 = vmatprep.subr.mxu0 0.0
    %822 = vmatpush1.msra.mxu0 0.0
    %823 = vmatprep.subr.mxu0 0.0
    %824 = vmatpush1.msra.mxu0 0.0
    %825 = vmatprep.subr.mxu0 0.0
    %826 = vmatpush1.msra.mxu0 0.0
    %827 = vmatprep.subr.mxu0 0.0
    %828 = vmatpush1.msra.mxu0 0.0
    %829 = vmatprep.subr.mxu0 0.0
    %830 = vmatpush1.msra.mxu0 0.0
    %831 = vmatprep.subr.mxu0 0.0
    %832 = vmatpush1.msra.mxu0 0.0
    %833 = vmatprep.subr.mxu0 0.0
    %834 = vmatpush1.msra.mxu0 0.0
    %835 = vmatprep.mubr.f32.mxu0 0.0
    %836 = vmatmul.mubr.f32.gmra.mrb[0].mxu0 %v769
    %v837 = vpop.f32.mrb[0].mxu0
    %v838 = vadd.f32 0.0, %v837
    %v839 = vpop.f32.mrb[0].mxu0
    %840 = vdwg.mxu0
    %841 = vrot.lane.b32.xlu0 %v166, 112
    %v842 = vpop.permute.xlu0 %841
    %843 = vrot.lane.b32.xlu0 %v158, 80
    %v844 = vpop.permute.xlu0 %843
    %v845 = vsel %vm171, %v842, 0
    %v847 = vsel %vm171, %v844, 0
    %849 = vmatprep.subr.mxu0 0.0
    %850 = vmatpush1.xpose.msra.mxu0 %v847
    %851 = vmatprep.subr.mxu0 0.0
    %852 = vmatpush1.xpose.msra.mxu0 0.0
    %853 = vmatprep.subr.mxu0 0.0
    %854 = vmatpush1.xpose.msra.mxu0 0.0
    %855 = vmatprep.subr.mxu0 0.0
    %856 = vmatpush1.xpose.msra.mxu0 0.0
    %857 = vmatprep.subr.mxu0 0.0
    %858 = vmatpush1.xpose.msra.mxu0 0.0
    %859 = vmatprep.subr.mxu0 0.0
    %860 = vmatpush1.xpose.msra.mxu0 0.0
    %861 = vmatprep.subr.mxu0 0.0
    %862 = vmatpush1.xpose.msra.mxu0 0.0
    %863 = vmatprep.subr.mxu0 0.0
    %864 = vmatpush1.xpose.msra.mxu0 0.0
    %865 = vmatprep.subr.mxu0 0.0
    %866 = vmatpush1.xpose.msra.mxu0 0.0
    %867 = vmatprep.subr.mxu0 0.0
    %868 = vmatpush1.xpose.msra.mxu0 0.0
    %869 = vmatprep.subr.mxu0 0.0
    %870 = vmatpush1.xpose.msra.mxu0 0.0
    %871 = vmatprep.subr.mxu0 0.0
    %872 = vmatpush1.xpose.msra.mxu0 0.0
    %873 = vmatprep.subr.mxu0 0.0
    %874 = vmatpush1.xpose.msra.mxu0 0.0
    %875 = vmatprep.subr.mxu0 0.0
    %876 = vmatpush1.xpose.msra.mxu0 0.0
    %877 = vmatprep.subr.mxu0 0.0
    %878 = vmatpush1.xpose.msra.mxu0 0.0
    %879 = vmatprep.subr.mxu0 0.0
    %880 = vmatpush1.xpose.msra.mxu0 0.0
    %881 = vmatprep.subr.mxu0 0.0
    %882 = vmatpush1.xpose.msra.mxu0 0.0
    %883 = vmatprep.subr.mxu0 0.0
    %884 = vmatpush1.xpose.msra.mxu0 0.0
    %885 = vmatprep.subr.mxu0 0.0
    %886 = vmatpush1.xpose.msra.mxu0 0.0
    %887 = vmatprep.subr.mxu0 0.0
    %888 = vmatpush1.xpose.msra.mxu0 0.0
    %889 = vmatprep.subr.mxu0 0.0
    %890 = vmatpush1.xpose.msra.mxu0 0.0
    %891 = vmatprep.subr.mxu0 0.0
    %892 = vmatpush1.xpose.msra.mxu0 0.0
    %893 = vmatprep.subr.mxu0 0.0
    %894 = vmatpush1.xpose.msra.mxu0 0.0
    %895 = vmatprep.subr.mxu0 0.0
    %896 = vmatpush1.xpose.msra.mxu0 0.0
    %897 = vmatprep.subr.mxu0 0.0
    %898 = vmatpush1.xpose.msra.mxu0 0.0
    %899 = vmatprep.subr.mxu0 0.0
    %900 = vmatpush1.xpose.msra.mxu0 0.0
    %901 = vmatprep.subr.mxu0 0.0
    %902 = vmatpush1.xpose.msra.mxu0 0.0
    %903 = vmatprep.subr.mxu0 0.0
    %904 = vmatpush1.xpose.msra.mxu0 0.0
    %905 = vmatprep.subr.mxu0 0.0
    %906 = vmatpush1.xpose.msra.mxu0 0.0
    %907 = vmatprep.subr.mxu0 0.0
    %908 = vmatpush1.xpose.msra.mxu0 0.0
    %909 = vmatprep.subr.mxu0 0.0
    %910 = vmatpush1.xpose.msra.mxu0 0.0
    %911 = vmatprep.subr.mxu0 0.0
    %912 = vmatpush1.xpose.msra.mxu0 0.0
    %913 = vmatprep.mubr.f32.mxu0 0.0
    %914 = vmatmul.mubr.f32.gmra.mrb[0].mxu0 %v845
    %v915 = vpop.f32.mrb[0].mxu0
    %v916 = vadd.f32 0.0, %v915
    %v917 = vpop.f32.mrb[0].mxu0
    %918 = vdwg.mxu0
    %919 = vrot.lane.b32.xlu0 %v167, 112
    %v920 = vpop.permute.xlu0 %919
    %921 = vrot.lane.b32.xlu0 %v163, 80
    %v922 = vpop.permute.xlu0 %921
    %v923 = vsel %vm171, %v920, 0
    %v925 = vsel %vm171, %v922, 0
    %927 = vmatprep.subr.mxu0 0.0
    %928 = vmatpush1.xpose.msra.mxu0 %v925
    %929 = vmatprep.subr.mxu0 0.0
    %930 = vmatpush1.xpose.msra.mxu0 0.0
    %931 = vmatprep.subr.mxu0 0.0
    %932 = vmatpush1.xpose.msra.mxu0 0.0
    %933 = vmatprep.subr.mxu0 0.0
    %934 = vmatpush1.xpose.msra.mxu0 0.0
    %935 = vmatprep.subr.mxu0 0.0
    %936 = vmatpush1.xpose.msra.mxu0 0.0
    %937 = vmatprep.subr.mxu0 0.0
    %938 = vmatpush1.xpose.msra.mxu0 0.0
    %939 = vmatprep.subr.mxu0 0.0
    %940 = vmatpush1.xpose.msra.mxu0 0.0
    %941 = vmatprep.subr.mxu0 0.0
    %942 = vmatpush1.xpose.msra.mxu0 0.0
    %943 = vmatprep.subr.mxu0 0.0
    %944 = vmatpush1.xpose.msra.mxu0 0.0
    %945 = vmatprep.subr.mxu0 0.0
    %946 = vmatpush1.xpose.msra.mxu0 0.0
    %947 = vmatprep.subr.mxu0 0.0
    %948 = vmatpush1.xpose.msra.mxu0 0.0
    %949 = vmatprep.subr.mxu0 0.0
    %950 = vmatpush1.xpose.msra.mxu0 0.0
    %951 = vmatprep.subr.mxu0 0.0
    %952 = vmatpush1.xpose.msra.mxu0 0.0
    %953 = vmatprep.subr.mxu0 0.0
    %954 = vmatpush1.xpose.msra.mxu0 0.0
    %955 = vmatprep.subr.mxu0 0.0
    %956 = vmatpush1.xpose.msra.mxu0 0.0
    %957 = vmatprep.subr.mxu0 0.0
    %958 = vmatpush1.xpose.msra.mxu0 0.0
    %959 = vmatprep.subr.mxu0 0.0
    %960 = vmatpush1.xpose.msra.mxu0 0.0
    %961 = vmatprep.subr.mxu0 0.0
    %962 = vmatpush1.xpose.msra.mxu0 0.0
    %963 = vmatprep.subr.mxu0 0.0
    %964 = vmatpush1.xpose.msra.mxu0 0.0
    %965 = vmatprep.subr.mxu0 0.0
    %966 = vmatpush1.xpose.msra.mxu0 0.0
    %967 = vmatprep.subr.mxu0 0.0
    %968 = vmatpush1.xpose.msra.mxu0 0.0
    %969 = vmatprep.subr.mxu0 0.0
    %970 = vmatpush1.xpose.msra.mxu0 0.0
    %971 = vmatprep.subr.mxu0 0.0
    %972 = vmatpush1.xpose.msra.mxu0 0.0
    %973 = vmatprep.subr.mxu0 0.0
    %974 = vmatpush1.xpose.msra.mxu0 0.0
    %975 = vmatprep.subr.mxu0 0.0
    %976 = vmatpush1.xpose.msra.mxu0 0.0
    %977 = vmatprep.subr.mxu0 0.0
    %978 = vmatpush1.xpose.msra.mxu0 0.0
    %979 = vmatprep.subr.mxu0 0.0
    %980 = vmatpush1.xpose.msra.mxu0 0.0
    %981 = vmatprep.subr.mxu0 0.0
    %982 = vmatpush1.xpose.msra.mxu0 0.0
    %983 = vmatprep.subr.mxu0 0.0
    %984 = vmatpush1.xpose.msra.mxu0 0.0
    %985 = vmatprep.subr.mxu0 0.0
    %986 = vmatpush1.xpose.msra.mxu0 0.0
    %987 = vmatprep.subr.mxu0 0.0
    %988 = vmatpush1.xpose.msra.mxu0 0.0
    %989 = vmatprep.subr.mxu0 0.0
    %990 = vmatpush1.xpose.msra.mxu0 0.0
    %991 = vmatprep.mubr.f32.mxu0 0.0
    %992 = vmatmul.mubr.f32.gmra.mrb[0].mxu0 %v923
    %v993 = vpop.f32.mrb[0].mxu0
    %v994 = vadd.f32 0.0, %v993
    %v995 = vpop.f32.mrb[0].mxu0
    %996 = vdwg.mxu0
    %v997 = vsel %vm171, %v916, -inf
    %998 = vmax.xlane.f32.xlu0 %v997
    %v999 = vpop.xlane.xlu0 %998
    %v1000 = vsel %vm171, %v994, -inf
    %1001 = vmax.xlane.f32.xlu0 %v1000
    %v1002 = vpop.xlane.xlu0 %1001
    %v1003 = vsub.f32 %v916, %v999
    %v1004 = vsub.f32 %v994, %v1002
    %v1005 = vmul.f32 %v1003, 1.442695
    %v1006 = vpow.pop %v1005
    %v1007 = vmul.f32 %v1004, 1.442695
    %v1008 = vpow.pop %v1007
    %v1009 = vsel %vm171, %v1006, 0.0
    %1010 = vadd.xlane.f32.xlu0 %v1009
    %v1011 = vpop.xlane.xlu0 %1010
    %v1012 = vsel %vm171, %v1008, 0.0
    %1013 = vadd.xlane.f32.xlu0 %v1012
    %v1014 = vpop.xlane.xlu0 %1013
    %v1015 = vrcp.pop %v1011
    %v1016 = vrcp.pop %v1014
    %v1017 = vmul.f32 %v1011, %v1015
    %v1018 = vmul.f32 %v1014, %v1016
    %v1019 = vsub.f32 2.0, %v1017
    %v1020 = vsub.f32 2.0, %v1018
    %v1021 = vmul.f32 %v1015, %v1019
    %v1022 = vmul.f32 %v1016, %v1020
    %v1023 = vmul.f32 %v1006, %v1021
    %v1024 = vmul.f32 %v1008, %v1022
    %1025 = vrot.lane.b32.xlu0 %v158, 48
    %v1026 = vpop.permute.xlu0 %1025
    %v1029 = vsel %vm171, %v1023, 0
    %1031 = vmatprep.subr.mxu0 0.0
    %1032 = vmatpush1.msra.mxu0 %v1026
    %1033 = vmatprep.subr.mxu0 0.0
    %1034 = vmatpush1.msra.mxu0 0.0
    %1035 = vmatprep.subr.mxu0 0.0
    %1036 = vmatpush1.msra.mxu0 0.0
    %1037 = vmatprep.subr.mxu0 0.0
    %1038 = vmatpush1.msra.mxu0 0.0
    %1039 = vmatprep.subr.mxu0 0.0
    %1040 = vmatpush1.msra.mxu0 0.0
    %1041 = vmatprep.subr.mxu0 0.0
    %1042 = vmatpush1.msra.mxu0 0.0
    %1043 = vmatprep.subr.mxu0 0.0
    %1044 = vmatpush1.msra.mxu0 0.0
    %1045 = vmatprep.subr.mxu0 0.0
    %1046 = vmatpush1.msra.mxu0 0.0
    %1047 = vmatprep.subr.mxu0 0.0
    %1048 = vmatpush1.msra.mxu0 0.0
    %1049 = vmatprep.subr.mxu0 0.0
    %1050 = vmatpush1.msra.mxu0 0.0
    %1051 = vmatprep.subr.mxu0 0.0
    %1052 = vmatpush1.msra.mxu0 0.0
    %1053 = vmatprep.subr.mxu0 0.0
    %1054 = vmatpush1.msra.mxu0 0.0
    %1055 = vmatprep.subr.mxu0 0.0
    %1056 = vmatpush1.msra.mxu0 0.0
    %1057 = vmatprep.subr.mxu0 0.0
    %1058 = vmatpush1.msra.mxu0 0.0
    %1059 = vmatprep.subr.mxu0 0.0
    %1060 = vmatpush1.msra.mxu0 0.0
    %1061 = vmatprep.subr.mxu0 0.0
    %1062 = vmatpush1.msra.mxu0 0.0
    %1063 = vmatprep.subr.mxu0 0.0
    %1064 = vmatpush1.msra.mxu0 0.0
    %1065 = vmatprep.subr.mxu0 0.0
    %1066 = vmatpush1.msra.mxu0 0.0
    %1067 = vmatprep.subr.mxu0 0.0
    %1068 = vmatpush1.msra.mxu0 0.0
    %1069 = vmatprep.subr.mxu0 0.0
    %1070 = vmatpush1.msra.mxu0 0.0
    %1071 = vmatprep.subr.mxu0 0.0
    %1072 = vmatpush1.msra.mxu0 0.0
    %1073 = vmatprep.subr.mxu0 0.0
    %1074 = vmatpush1.msra.mxu0 0.0
    %1075 = vmatprep.subr.mxu0 0.0
    %1076 = vmatpush1.msra.mxu0 0.0
    %1077 = vmatprep.subr.mxu0 0.0
    %1078 = vmatpush1.msra.mxu0 0.0
    %1079 = vmatprep.subr.mxu0 0.0
    %1080 = vmatpush1.msra.mxu0 0.0
    %1081 = vmatprep.subr.mxu0 0.0
    %1082 = vmatpush1.msra.mxu0 0.0
    %1083 = vmatprep.subr.mxu0 0.0
    %1084 = vmatpush1.msra.mxu0 0.0
    %1085 = vmatprep.subr.mxu0 0.0
    %1086 = vmatpush1.msra.mxu0 0.0
    %1087 = vmatprep.subr.mxu0 0.0
    %1088 = vmatpush1.msra.mxu0 0.0
    %1089 = vmatprep.subr.mxu0 0.0
    %1090 = vmatpush1.msra.mxu0 0.0
    %1091 = vmatprep.subr.mxu0 0.0
    %1092 = vmatpush1.msra.mxu0 0.0
    %1093 = vmatprep.subr.mxu0 0.0
    %1094 = vmatpush1.msra.mxu0 0.0
    %1095 = vmatprep.mubr.f32.mxu0 0.0
    %1096 = vmatmul.mubr.f32.gmra.mrb[0].mxu0 %v1029
    %v1097 = vpop.f32.mrb[0].mxu0
    %v1098 = vadd.f32 0.0, %v1097
    %v1099 = vpop.f32.mrb[0].mxu0
    %1100 = vdwg.mxu0
    %1101 = vrot.lane.b32.xlu0 %v163, 48
    %v1102 = vpop.permute.xlu0 %1101
    %v1105 = vsel %vm171, %v1024, 0
    %1107 = vmatprep.subr.mxu0 0.0
    %1108 = vmatpush1.msra.mxu0 %v1102
    %1109 = vmatprep.subr.mxu0 0.0
    %1110 = vmatpush1.msra.mxu0 0.0
    %1111 = vmatprep.subr.mxu0 0.0
    %1112 = vmatpush1.msra.mxu0 0.0
    %1113 = vmatprep.subr.mxu0 0.0
    %1114 = vmatpush1.msra.mxu0 0.0
    %1115 = vmatprep.subr.mxu0 0.0
    %1116 = vmatpush1.msra.mxu0 0.0
    %1117 = vmatprep.subr.mxu0 0.0
    %1118 = vmatpush1.msra.mxu0 0.0
    %1119 = vmatprep.subr.mxu0 0.0
    %1120 = vmatpush1.msra.mxu0 0.0
    %1121 = vmatprep.subr.mxu0 0.0
    %1122 = vmatpush1.msra.mxu0 0.0
    %1123 = vmatprep.subr.mxu0 0.0
    %1124 = vmatpush1.msra.mxu0 0.0
    %1125 = vmatprep.subr.mxu0 0.0
    %1126 = vmatpush1.msra.mxu0 0.0
    %1127 = vmatprep.subr.mxu0 0.0
    %1128 = vmatpush1.msra.mxu0 0.0
    %1129 = vmatprep.subr.mxu0 0.0
    %1130 = vmatpush1.msra.mxu0 0.0
    %1131 = vmatprep.subr.mxu0 0.0
    %1132 = vmatpush1.msra.mxu0 0.0
    %1133 = vmatprep.subr.mxu0 0.0
    %1134 = vmatpush1.msra.mxu0 0.0
    %1135 = vmatprep.subr.mxu0 0.0
    %1136 = vmatpush1.msra.mxu0 0.0
    %1137 = vmatprep.subr.mxu0 0.0
    %1138 = vmatpush1.msra.mxu0 0.0
    %1139 = vmatprep.subr.mxu0 0.0
    %1140 = vmatpush1.msra.mxu0 0.0
    %1141 = vmatprep.subr.mxu0 0.0
    %1142 = vmatpush1.msra.mxu0 0.0
    %1143 = vmatprep.subr.mxu0 0.0
    %1144 = vmatpush1.msra.mxu0 0.0
    %1145 = vmatprep.subr.mxu0 0.0
    %1146 = vmatpush1.msra.mxu0 0.0
    %1147 = vmatprep.subr.mxu0 0.0
    %1148 = vmatpush1.msra.mxu0 0.0
    %1149 = vmatprep.subr.mxu0 0.0
    %1150 = vmatpush1.msra.mxu0 0.0
    %1151 = vmatprep.subr.mxu0 0.0
    %1152 = vmatpush1.msra.mxu0 0.0
    %1153 = vmatprep.subr.mxu0 0.0
    %1154 = vmatpush1.msra.mxu0 0.0
    %1155 = vmatprep.subr.mxu0 0.0
    %1156 = vmatpush1.msra.mxu0 0.0
    %1157 = vmatprep.subr.mxu0 0.0
    %1158 = vmatpush1.msra.mxu0 0.0
    %1159 = vmatprep.subr.mxu0 0.0
    %1160 = vmatpush1.msra.mxu0 0.0
    %1161 = vmatprep.subr.mxu0 0.0
    %1162 = vmatpush1.msra.mxu0 0.0
    %1163 = vmatprep.subr.mxu0 0.0
    %1164 = vmatpush1.msra.mxu0 0.0
    %1165 = vmatprep.subr.mxu0 0.0
    %1166 = vmatpush1.msra.mxu0 0.0
    %1167 = vmatprep.subr.mxu0 0.0
    %1168 = vmatpush1.msra.mxu0 0.0
    %1169 = vmatprep.subr.mxu0 0.0
    %1170 = vmatpush1.msra.mxu0 0.0
    %1171 = vmatprep.mubr.f32.mxu0 0.0
    %1172 = vmatmul.mubr.f32.gmra.mrb[0].mxu0 %v1105
    %v1173 = vpop.f32.mrb[0].mxu0
    %v1174 = vadd.f32 0.0, %v1173
    %v1175 = vpop.f32.mrb[0].mxu0
    %1176 = vdwg.mxu0
    %1177 = vrot.lane.b32.xlu0 %v166, 104
    %v1178 = vpop.permute.xlu0 %1177
    %1179 = vrot.lane.b32.xlu0 %v158, 72
    %v1180 = vpop.permute.xlu0 %1179
    %v1181 = vsel %vm171, %v1178, 0
    %v1183 = vsel %vm171, %v1180, 0
    %1185 = vmatprep.subr.mxu0 0.0
    %1186 = vmatpush1.xpose.msra.mxu0 %v1183
    %1187 = vmatprep.subr.mxu0 0.0
    %1188 = vmatpush1.xpose.msra.mxu0 0.0
    %1189 = vmatprep.subr.mxu0 0.0
    %1190 = vmatpush1.xpose.msra.mxu0 0.0
    %1191 = vmatprep.subr.mxu0 0.0
    %1192 = vmatpush1.xpose.msra.mxu0 0.0
    %1193 = vmatprep.subr.mxu0 0.0
    %1194 = vmatpush1.xpose.msra.mxu0 0.0
    %1195 = vmatprep.subr.mxu0 0.0
    %1196 = vmatpush1.xpose.msra.mxu0 0.0
    %1197 = vmatprep.subr.mxu0 0.0
    %1198 = vmatpush1.xpose.msra.mxu0 0.0
    %1199 = vmatprep.subr.mxu0 0.0
    %1200 = vmatpush1.xpose.msra.mxu0 0.0
    %1201 = vmatprep.subr.mxu0 0.0
    %1202 = vmatpush1.xpose.msra.mxu0 0.0
    %1203 = vmatprep.subr.mxu0 0.0
    %1204 = vmatpush1.xpose.msra.mxu0 0.0
    %1205 = vmatprep.subr.mxu0 0.0
    %1206 = vmatpush1.xpose.msra.mxu0 0.0
    %1207 = vmatprep.subr.mxu0 0.0
    %1208 = vmatpush1.xpose.msra.mxu0 0.0
    %1209 = vmatprep.subr.mxu0 0.0
    %1210 = vmatpush1.xpose.msra.mxu0 0.0
    %1211 = vmatprep.subr.mxu0 0.0
    %1212 = vmatpush1.xpose.msra.mxu0 0.0
    %1213 = vmatprep.subr.mxu0 0.0
    %1214 = vmatpush1.xpose.msra.mxu0 0.0
    %1215 = vmatprep.subr.mxu0 0.0
    %1216 = vmatpush1.xpose.msra.mxu0 0.0
    %1217 = vmatprep.subr.mxu0 0.0
    %1218 = vmatpush1.xpose.msra.mxu0 0.0
    %1219 = vmatprep.subr.mxu0 0.0
    %1220 = vmatpush1.xpose.msra.mxu0 0.0
    %1221 = vmatprep.subr.mxu0 0.0
    %1222 = vmatpush1.xpose.msra.mxu0 0.0
    %1223 = vmatprep.subr.mxu0 0.0
    %1224 = vmatpush1.xpose.msra.mxu0 0.0
    %1225 = vmatprep.subr.mxu0 0.0
    %1226 = vmatpush1.xpose.msra.mxu0 0.0
    %1227 = vmatprep.subr.mxu0 0.0
    %1228 = vmatpush1.xpose.msra.mxu0 0.0
    %1229 = vmatprep.subr.mxu0 0.0
    %1230 = vmatpush1.xpose.msra.mxu0 0.0
    %1231 = vmatprep.subr.mxu0 0.0
    %1232 = vmatpush1.xpose.msra.mxu0 0.0
    %1233 = vmatprep.subr.mxu0 0.0
    %1234 = vmatpush1.xpose.msra.mxu0 0.0
    %1235 = vmatprep.subr.mxu0 0.0
    %1236 = vmatpush1.xpose.msra.mxu0 0.0
    %1237 = vmatprep.subr.mxu0 0.0
    %1238 = vmatpush1.xpose.msra.mxu0 0.0
    %1239 = vmatprep.subr.mxu0 0.0
    %1240 = vmatpush1.xpose.msra.mxu0 0.0
    %1241 = vmatprep.subr.mxu0 0.0
    %1242 = vmatpush1.xpose.msra.mxu0 0.0
    %1243 = vmatprep.subr.mxu0 0.0
    %1244 = vmatpush1.xpose.msra.mxu0 0.0
    %1245 = vmatprep.subr.mxu0 0.0
    %1246 = vmatpush1.xpose.msra.mxu0 0.0
    %1247 = vmatprep.subr.mxu0 0.0
    %1248 = vmatpush1.xpose.msra.mxu0 0.0
    %1249 = vmatprep.mubr.f32.mxu0 0.0
    %1250 = vmatmul.mubr.f32.gmra.mrb[0].mxu0 %v1181
    %v1251 = vpop.f32.mrb[0].mxu0
    %v1252 = vadd.f32 0.0, %v1251
    %v1253 = vpop.f32.mrb[0].mxu0
    %1254 = vdwg.mxu0
    %1255 = vrot.lane.b32.xlu0 %v167, 104
    %v1256 = vpop.permute.xlu0 %1255
    %1257 = vrot.lane.b32.xlu0 %v163, 72
    %v1258 = vpop.permute.xlu0 %1257
    %v1259 = vsel %vm171, %v1256, 0
    %v1261 = vsel %vm171, %v1258, 0
    %1263 = vmatprep.subr.mxu0 0.0
    %1264 = vmatpush1.xpose.msra.mxu0 %v1261
    %1265 = vmatprep.subr.mxu0 0.0
    %1266 = vmatpush1.xpose.msra.mxu0 0.0
    %1267 = vmatprep.subr.mxu0 0.0
    %1268 = vmatpush1.xpose.msra.mxu0 0.0
    %1269 = vmatprep.subr.mxu0 0.0
    %1270 = vmatpush1.xpose.msra.mxu0 0.0
    %1271 = vmatprep.subr.mxu0 0.0
    %1272 = vmatpush1.xpose.msra.mxu0 0.0
    %1273 = vmatprep.subr.mxu0 0.0
    %1274 = vmatpush1.xpose.msra.mxu0 0.0
    %1275 = vmatprep.subr.mxu0 0.0
    %1276 = vmatpush1.xpose.msra.mxu0 0.0
    %1277 = vmatprep.subr.mxu0 0.0
    %1278 = vmatpush1.xpose.msra.mxu0 0.0
    %1279 = vmatprep.subr.mxu0 0.0
    %1280 = vmatpush1.xpose.msra.mxu0 0.0
    %1281 = vmatprep.subr.mxu0 0.0
    %1282 = vmatpush1.xpose.msra.mxu0 0.0
    %1283 = vmatprep.subr.mxu0 0.0
    %1284 = vmatpush1.xpose.msra.mxu0 0.0
    %1285 = vmatprep.subr.mxu0 0.0
    %1286 = vmatpush1.xpose.msra.mxu0 0.0
    %1287 = vmatprep.subr.mxu0 0.0
    %1288 = vmatpush1.xpose.msra.mxu0 0.0
    %1289 = vmatprep.subr.mxu0 0.0
    %1290 = vmatpush1.xpose.msra.mxu0 0.0
    %1291 = vmatprep.subr.mxu0 0.0
    %1292 = vmatpush1.xpose.msra.mxu0 0.0
    %1293 = vmatprep.subr.mxu0 0.0
    %1294 = vmatpush1.xpose.msra.mxu0 0.0
    %1295 = vmatprep.subr.mxu0 0.0
    %1296 = vmatpush1.xpose.msra.mxu0 0.0
    %1297 = vmatprep.subr.mxu0 0.0
    %1298 = vmatpush1.xpose.msra.mxu0 0.0
    %1299 = vmatprep.subr.mxu0 0.0
    %1300 = vmatpush1.xpose.msra.mxu0 0.0
    %1301 = vmatprep.subr.mxu0 0.0
    %1302 = vmatpush1.xpose.msra.mxu0 0.0
    %1303 = vmatprep.subr.mxu0 0.0
    %1304 = vmatpush1.xpose.msra.mxu0 0.0
    %1305 = vmatprep.subr.mxu0 0.0
    %1306 = vmatpush1.xpose.msra.mxu0 0.0
    %1307 = vmatprep.subr.mxu0 0.0
    %1308 = vmatpush1.xpose.msra.mxu0 0.0
    %1309 = vmatprep.subr.mxu0 0.0
    %1310 = vmatpush1.xpose.msra.mxu0 0.0
    %1311 = vmatprep.subr.mxu0 0.0
    %1312 = vmatpush1.xpose.msra.mxu0 0.0
    %1313 = vmatprep.subr.mxu0 0.0
    %1314 = vmatpush1.xpose.msra.mxu0 0.0
    %1315 = vmatprep.subr.mxu0 0.0
    %1316 = vmatpush1.xpose.msra.mxu0 0.0
    %1317 = vmatprep.subr.mxu0 0.0
    %1318 = vmatpush1.xpose.msra.mxu0 0.0
    %1319 = vmatprep.subr.mxu0 0.0
    %1320 = vmatpush1.xpose.msra.mxu0 0.0
    %1321 = vmatprep.subr.mxu0 0.0
    %1322 = vmatpush1.xpose.msra.mxu0 0.0
    %1323 = vmatprep.subr.mxu0 0.0
    %1324 = vmatpush1.xpose.msra.mxu0 0.0
    %1325 = vmatprep.subr.mxu0 0.0
    %1326 = vmatpush1.xpose.msra.mxu0 0.0
    %1327 = vmatprep.mubr.f32.mxu0 0.0
    %1328 = vmatmul.mubr.f32.gmra.mrb[0].mxu0 %v1259
    %v1329 = vpop.f32.mrb[0].mxu0
    %v1330 = vadd.f32 0.0, %v1329
    %v1331 = vpop.f32.mrb[0].mxu0
    %1332 = vdwg.mxu0
    %v1333 = vsel %vm171, %v1252, -inf
    %1334 = vmax.xlane.f32.xlu0 %v1333
    %v1335 = vpop.xlane.xlu0 %1334
    %v1336 = vsel %vm171, %v1330, -inf
    %1337 = vmax.xlane.f32.xlu0 %v1336
    %v1338 = vpop.xlane.xlu0 %1337
    %v1339 = vsub.f32 %v1252, %v1335
    %v1340 = vsub.f32 %v1330, %v1338
    %v1341 = vmul.f32 %v1339, 1.442695
    %v1342 = vpow.pop %v1341
    %v1343 = vmul.f32 %v1340, 1.442695
    %v1344 = vpow.pop %v1343
    %v1345 = vsel %vm171, %v1342, 0.0
    %1346 = vadd.xlane.f32.xlu0 %v1345
    %v1347 = vpop.xlane.xlu0 %1346
    %v1348 = vsel %vm171, %v1344, 0.0
    %1349 = vadd.xlane.f32.xlu0 %v1348
    %v1350 = vpop.xlane.xlu0 %1349
    %v1351 = vrcp.pop %v1347
    %v1352 = vrcp.pop %v1350
    %v1353 = vmul.f32 %v1347, %v1351
    %v1354 = vmul.f32 %v1350, %v1352
    %v1355 = vsub.f32 2.0, %v1353
    %v1356 = vsub.f32 2.0, %v1354
    %v1357 = vmul.f32 %v1351, %v1355
    %v1358 = vmul.f32 %v1352, %v1356
    %v1359 = vmul.f32 %v1342, %v1357
    %v1360 = vmul.f32 %v1344, %v1358
    %1361 = vrot.lane.b32.xlu0 %v158, 40
    %v1362 = vpop.permute.xlu0 %1361
    %v1365 = vsel %vm171, %v1359, 0
    %1367 = vmatprep.subr.mxu0 0.0
    %1368 = vmatpush1.msra.mxu0 %v1362
    %1369 = vmatprep.subr.mxu0 0.0
    %1370 = vmatpush1.msra.mxu0 0.0
    %1371 = vmatprep.subr.mxu0 0.0
    %1372 = vmatpush1.msra.mxu0 0.0
    %1373 = vmatprep.subr.mxu0 0.0
    %1374 = vmatpush1.msra.mxu0 0.0
    %1375 = vmatprep.subr.mxu0 0.0
    %1376 = vmatpush1.msra.mxu0 0.0
    %1377 = vmatprep.subr.mxu0 0.0
    %1378 = vmatpush1.msra.mxu0 0.0
    %1379 = vmatprep.subr.mxu0 0.0
    %1380 = vmatpush1.msra.mxu0 0.0
    %1381 = vmatprep.subr.mxu0 0.0
    %1382 = vmatpush1.msra.mxu0 0.0
    %1383 = vmatprep.subr.mxu0 0.0
    %1384 = vmatpush1.msra.mxu0 0.0
    %1385 = vmatprep.subr.mxu0 0.0
    %1386 = vmatpush1.msra.mxu0 0.0
    %1387 = vmatprep.subr.mxu0 0.0
    %1388 = vmatpush1.msra.mxu0 0.0
    %1389 = vmatprep.subr.mxu0 0.0
    %1390 = vmatpush1.msra.mxu0 0.0
    %1391 = vmatprep.subr.mxu0 0.0
    %1392 = vmatpush1.msra.mxu0 0.0
    %1393 = vmatprep.subr.mxu0 0.0
    %1394 = vmatpush1.msra.mxu0 0.0
    %1395 = vmatprep.subr.mxu0 0.0
    %1396 = vmatpush1.msra.mxu0 0.0
    %1397 = vmatprep.subr.mxu0 0.0
    %1398 = vmatpush1.msra.mxu0 0.0
    %1399 = vmatprep.subr.mxu0 0.0
    %1400 = vmatpush1.msra.mxu0 0.0
    %1401 = vmatprep.subr.mxu0 0.0
    %1402 = vmatpush1.msra.mxu0 0.0
    %1403 = vmatprep.subr.mxu0 0.0
    %1404 = vmatpush1.msra.mxu0 0.0
    %1405 = vmatprep.subr.mxu0 0.0
    %1406 = vmatpush1.msra.mxu0 0.0
    %1407 = vmatprep.subr.mxu0 0.0
    %1408 = vmatpush1.msra.mxu0 0.0
    %1409 = vmatprep.subr.mxu0 0.0
    %1410 = vmatpush1.msra.mxu0 0.0
    %1411 = vmatprep.subr.mxu0 0.0
    %1412 = vmatpush1.msra.mxu0 0.0
    %1413 = vmatprep.subr.mxu0 0.0
    %1414 = vmatpush1.msra.mxu0 0.0
    %1415 = vmatprep.subr.mxu0 0.0
    %1416 = vmatpush1.msra.mxu0 0.0
    %1417 = vmatprep.subr.mxu0 0.0
    %1418 = vmatpush1.msra.mxu0 0.0
    %1419 = vmatprep.subr.mxu0 0.0
    %1420 = vmatpush1.msra.mxu0 0.0
    %1421 = vmatprep.subr.mxu0 0.0
    %1422 = vmatpush1.msra.mxu0 0.0
    %1423 = vmatprep.subr.mxu0 0.0
    %1424 = vmatpush1.msra.mxu0 0.0
    %1425 = vmatprep.subr.mxu0 0.0
    %1426 = vmatpush1.msra.mxu0 0.0
    %1427 = vmatprep.subr.mxu0 0.0
    %1428 = vmatpush1.msra.mxu0 0.0
    %1429 = vmatprep.subr.mxu0 0.0
    %1430 = vmatpush1.msra.mxu0 0.0
    %1431 = vmatprep.mubr.f32.mxu0 0.0
    %1432 = vmatmul.mubr.f32.gmra.mrb[0].mxu0 %v1365
    %v1433 = vpop.f32.mrb[0].mxu0
    %v1434 = vadd.f32 0.0, %v1433
    %v1435 = vpop.f32.mrb[0].mxu0
    %1436 = vdwg.mxu0
    %1437 = vrot.lane.b32.xlu0 %v163, 40
    %v1438 = vpop.permute.xlu0 %1437
    %v1441 = vsel %vm171, %v1360, 0
    %1443 = vmatprep.subr.mxu0 0.0
    %1444 = vmatpush1.msra.mxu0 %v1438
    %1445 = vmatprep.subr.mxu0 0.0
    %1446 = vmatpush1.msra.mxu0 0.0
    %1447 = vmatprep.subr.mxu0 0.0
    %1448 = vmatpush1.msra.mxu0 0.0
    %1449 = vmatprep.subr.mxu0 0.0
    %1450 = vmatpush1.msra.mxu0 0.0
    %1451 = vmatprep.subr.mxu0 0.0
    %1452 = vmatpush1.msra.mxu0 0.0
    %1453 = vmatprep.subr.mxu0 0.0
    %1454 = vmatpush1.msra.mxu0 0.0
    %1455 = vmatprep.subr.mxu0 0.0
    %1456 = vmatpush1.msra.mxu0 0.0
    %1457 = vmatprep.subr.mxu0 0.0
    %1458 = vmatpush1.msra.mxu0 0.0
    %1459 = vmatprep.subr.mxu0 0.0
    %1460 = vmatpush1.msra.mxu0 0.0
    %1461 = vmatprep.subr.mxu0 0.0
    %1462 = vmatpush1.msra.mxu0 0.0
    %1463 = vmatprep.subr.mxu0 0.0
    %1464 = vmatpush1.msra.mxu0 0.0
    %1465 = vmatprep.subr.mxu0 0.0
    %1466 = vmatpush1.msra.mxu0 0.0
    %1467 = vmatprep.subr.mxu0 0.0
    %1468 = vmatpush1.msra.mxu0 0.0
    %1469 = vmatprep.subr.mxu0 0.0
    %1470 = vmatpush1.msra.mxu0 0.0
    %1471 = vmatprep.subr.mxu0 0.0
    %1472 = vmatpush1.msra.mxu0 0.0
    %1473 = vmatprep.subr.mxu0 0.0
    %1474 = vmatpush1.msra.mxu0 0.0
    %1475 = vmatprep.subr.mxu0 0.0
    %1476 = vmatpush1.msra.mxu0 0.0
    %1477 = vmatprep.subr.mxu0 0.0
    %1478 = vmatpush1.msra.mxu0 0.0
    %1479 = vmatprep.subr.mxu0 0.0
    %1480 = vmatpush1.msra.mxu0 0.0
    %1481 = vmatprep.subr.mxu0 0.0
    %1482 = vmatpush1.msra.mxu0 0.0
    %1483 = vmatprep.subr.mxu0 0.0
    %1484 = vmatpush1.msra.mxu0 0.0
    %1485 = vmatprep.subr.mxu0 0.0
    %1486 = vmatpush1.msra.mxu0 0.0
    %1487 = vmatprep.subr.mxu0 0.0
    %1488 = vmatpush1.msra.mxu0 0.0
    %1489 = vmatprep.subr.mxu0 0.0
    %1490 = vmatpush1.msra.mxu0 0.0
    %1491 = vmatprep.subr.mxu0 0.0
    %1492 = vmatpush1.msra.mxu0 0.0
    %1493 = vmatprep.subr.mxu0 0.0
    %1494 = vmatpush1.msra.mxu0 0.0
    %1495 = vmatprep.subr.mxu0 0.0
    %1496 = vmatpush1.msra.mxu0 0.0
    %1497 = vmatprep.subr.mxu0 0.0
    %1498 = vmatpush1.msra.mxu0 0.0
    %1499 = vmatprep.subr.mxu0 0.0
    %1500 = vmatpush1.msra.mxu0 0.0
    %1501 = vmatprep.subr.mxu0 0.0
    %1502 = vmatpush1.msra.mxu0 0.0
    %1503 = vmatprep.subr.mxu0 0.0
    %1504 = vmatpush1.msra.mxu0 0.0
    %1505 = vmatprep.subr.mxu0 0.0
    %1506 = vmatpush1.msra.mxu0 0.0
    %1507 = vmatprep.mubr.f32.mxu0 0.0
    %1508 = vmatmul.mubr.f32.gmra.mrb[0].mxu0 %v1441
    %v1509 = vpop.f32.mrb[0].mxu0
    %v1510 = vadd.f32 0.0, %v1509
    %v1511 = vpop.f32.mrb[0].mxu0
    %1512 = vdwg.mxu0
    %1513 = vst.msk [vmem:[#allocation9] sm:$0xff] %vm171, %v351
    %1514 = vst.msk [vmem:[#allocation9 + $0x8] sm:$0xff] %vm171, %v687
    %1515 = vst.msk [vmem:[#allocation9 + $0x10] sm:$0xff] %vm171, %v1023
    %1516 = vst.msk [vmem:[#allocation9 + $0x18] sm:$0xff] %vm171, %v1359
    %1517 = vst.msk [vmem:[#allocation9 + $0x20] sm:$0xff] %vm171, %v352
    %1518 = vst.msk [vmem:[#allocation9 + $0x28] sm:$0xff] %vm171, %v688
    %1519 = vst.msk [vmem:[#allocation9 + $0x30] sm:$0xff] %vm171, %v1024
    %1520 = vst.msk [vmem:[#allocation9 + $0x38] sm:$0xff] %vm171, %v1360
    %1523 = vrot.lane.b32.xlu0 %v762, 8
    %v1524 = vpop.permute.xlu0 %1523
    %1525 = vrot.lane.b32.xlu0 %v838, 8
    %v1526 = vpop.permute.xlu0 %1525
    %1531 = vrot.lane.b32.xlu0 %v1098, 16
    %v1532 = vpop.permute.xlu0 %1531
    %1533 = vrot.lane.b32.xlu0 %v1174, 16
    %v1534 = vpop.permute.xlu0 %1533
    %1539 = vrot.lane.b32.xlu0 %v1434, 24
    %v1540 = vpop.permute.xlu0 %1539
    %1541 = vrot.lane.b32.xlu0 %v1510, 24
    %v1542 = vpop.permute.xlu0 %1541
    %v1545 = vsel %vm171, %v426, %v1524
    %v1546 = vsel %vm171, %v502, %v1526
    %vm1547 = vcmask 130048
    %v1548 = vsel %vm1547, %v1545, %v1532
    %v1549 = vsel %vm1547, %v1546, %v1534
    %vm1550 = vcmask 195584
    %v1551 = vsel %vm1550, %v1548, %v1540
    %v1552 = vsel %vm1550, %v1549, %v1542
    %v1553 = vld [vmem:[#allocation7] sm:$0xff]
    %v1554 = vld [vmem:[#allocation7 + $0x8] sm:$0xff]
    %v1555 = vld [vmem:[#allocation7 + $0x10] sm:$0xff]
    %v1556 = vld [vmem:[#allocation7 + $0x18] sm:$0xff]
    %v1557 = vld [vmem:[%s4] sm:$0x1]
    %v1559 = vlaneseq
    %v1560 = vshrl.u32 %v1559, 7
    %v1561 = vsub.s32 0, %v1560
    %v1562 = vrot.slane %v1557, %v1561
    %v1565 = vsel %vm84, %v1551, 0
    %v1568 = vsel %vm84, %v1552, 0
    %1570 = vmatprep.subr.mxu0 0.0
    %1571 = vmatpush1.msra.mxu0 %v1553
    %1572 = vmatprep.subr.mxu0 0.0
    %1573 = vmatpush1.msra.mxu0 %v1554
    %1574 = vmatprep.subr.mxu0 0.0
    %1575 = vmatpush1.msra.mxu0 %v1555
    %1576 = vmatprep.subr.mxu0 0.0
    %1577 = vmatpush1.msra.mxu0 %v1556
    %1578 = vmatprep.subr.mxu0 0.0
    %1579 = vmatpush1.msra.mxu0 0.0
    %1580 = vmatprep.subr.mxu0 0.0
    %1581 = vmatpush1.msra.mxu0 0.0
    %1582 = vmatprep.subr.mxu0 0.0
    %1583 = vmatpush1.msra.mxu0 0.0
    %1584 = vmatprep.subr.mxu0 0.0
    %1585 = vmatpush1.msra.mxu0 0.0
    %1586 = vmatprep.subr.mxu0 0.0
    %1587 = vmatpush1.msra.mxu0 0.0
    %1588 = vmatprep.subr.mxu0 0.0
    %1589 = vmatpush1.msra.mxu0 0.0
    %1590 = vmatprep.subr.mxu0 0.0
    %1591 = vmatpush1.msra.mxu0 0.0
    %1592 = vmatprep.subr.mxu0 0.0
    %1593 = vmatpush1.msra.mxu0 0.0
    %1594 = vmatprep.subr.mxu0 0.0
    %1595 = vmatpush1.msra.mxu0 0.0
    %1596 = vmatprep.subr.mxu0 0.0
    %1597 = vmatpush1.msra.mxu0 0.0
    %1598 = vmatprep.subr.mxu0 0.0
    %1599 = vmatpush1.msra.mxu0 0.0
    %1600 = vmatprep.subr.mxu0 0.0
    %1601 = vmatpush1.msra.mxu0 0.0
    %1602 = vmatprep.subr.mxu0 0.0
    %1603 = vmatpush1.msra.mxu0 0.0
    %1604 = vmatprep.subr.mxu0 0.0
    %1605 = vmatpush1.msra.mxu0 0.0
    %1606 = vmatprep.subr.mxu0 0.0
    %1607 = vmatpush1.msra.mxu0 0.0
    %1608 = vmatprep.subr.mxu0 0.0
    %1609 = vmatpush1.msra.mxu0 0.0
    %1610 = vmatprep.subr.mxu0 0.0
    %1611 = vmatpush1.msra.mxu0 0.0
    %1612 = vmatprep.subr.mxu0 0.0
    %1613 = vmatpush1.msra.mxu0 0.0
    %1614 = vmatprep.subr.mxu0 0.0
    %1615 = vmatpush1.msra.mxu0 0.0
    %1616 = vmatprep.subr.mxu0 0.0
    %1617 = vmatpush1.msra.mxu0 0.0
    %1618 = vmatprep.subr.mxu0 0.0
    %1619 = vmatpush1.msra.mxu0 0.0
    %1620 = vmatprep.subr.mxu0 0.0
    %1621 = vmatpush1.msra.mxu0 0.0
    %1622 = vmatprep.subr.mxu0 0.0
    %1623 = vmatpush1.msra.mxu0 0.0
    %1624 = vmatprep.subr.mxu0 0.0
    %1625 = vmatpush1.msra.mxu0 0.0
    %1626 = vmatprep.subr.mxu0 0.0
    %1627 = vmatpush1.msra.mxu0 0.0
    %1628 = vmatprep.subr.mxu0 0.0
    %1629 = vmatpush1.msra.mxu0 0.0
    %1630 = vmatprep.subr.mxu0 0.0
    %1631 = vmatpush1.msra.mxu0 0.0
    %1632 = vmatprep.subr.mxu0 0.0
    %1633 = vmatpush1.msra.mxu0 0.0
    %1634 = vmatprep.mubr.f32.mxu0 0.0
    %1635 = vmatmul.mubr.f32.gmra.mrb[0].mxu0 %v1565
    %v1636 = vpop.f32.mrb[0].mxu0
    %v1637 = vadd.f32 %v1562, %v1636
    %v1638 = vpop.f32.mrb[0].mxu0
    %1639 = vmatprep.mubr.f32.mxu0 0.0
    %1640 = vmatmul.mubr.f32.gmra.mrb[0].mxu0 %v1568
    %v1641 = vpop.f32.mrb[0].mxu0
    %v1642 = vadd.f32 %v1562, %v1641
    %v1643 = vpop.f32.mrb[0].mxu0
    %1644 = vdwg.mxu0
    %v1645 = vadd.f32 %v71, %v1637
    %v1646 = vadd.f32 %v72, %v1642
    %v1647 = vsel %vm84, %v1645, 0.0
    %1648 = vadd.xlane.f32.xlu0 %v1647
    %v1649 = vpop.xlane.xlu0 %1648
    %v1650 = vsel %vm84, %v1646, 0.0
    %1651 = vadd.xlane.f32.xlu0 %v1650
    %v1652 = vpop.xlane.xlu0 %1651
    %v1653 = vrcp.pop 32.0
    %v1654 = vmul.f32 %v1649, %v1653
    %v1655 = vmul.f32 %v1652, %v1653
    %v1656 = vsub.f32 %v1645, %v1654
    %v1657 = vsub.f32 %v1646, %v1655
    %v1658 = vmul.f32 %v1656, %v1656
    %v1659 = vmul.f32 %v1657, %v1657
    %v1660 = vsel %vm84, %v1658, 0.0
    %1661 = vadd.xlane.f32.xlu0 %v1660
    %v1662 = vpop.xlane.xlu0 %1661
    %v1663 = vsel %vm84, %v1659, 0.0
    %1664 = vadd.xlane.f32.xlu0 %v1663
    %v1665 = vpop.xlane.xlu0 %1664
    %v1666 = vmul.f32 %v1662, %v1653
    %v1667 = vmul.f32 %v1665, %v1653
    %v1668 = vadd.f32 %v1666, 1e-05
    %v1669 = vadd.f32 %v1667, 1e-05
    %v1670 = vrsqrt.pop %v1668
    %v1671 = vrsqrt.pop %v1669
    %v1672 = vmul.f32 %v1656, %v1670
    %v1673 = vmul.f32 %v1657, %v1671
    %v1674 = vld [vmem:[%s5] sm:$0x1]
    %v1676 = vlaneseq
    %v1677 = vshrl.u32 %v1676, 7
    %v1678 = vsub.s32 0, %v1677
    %v1679 = vrot.slane %v1674, %v1678
    %v1681 = vmul.f32 %v1672, %v1679
    %v1682 = vmul.f32 %v1673, %v1679
    %v1683 = vld [vmem:[%s6] sm:$0x1]
    %v1685 = vlaneseq
    %v1686 = vshrl.u32 %v1685, 7
    %v1687 = vsub.s32 0, %v1686
    %v1688 = vrot.slane %v1683, %v1687
    %v1690 = vadd.f32 %v1681, %v1688
    %v1691 = vadd.f32 %v1682, %v1688
    %1692 = vst.msk [vmem:[#allocation8] sm:$0xff] %vm84, %v1690
    %1693 = vst.msk [vmem:[#allocation8 + $0x8] sm:$0xff] %vm84, %v1691
    // Predicated region
    $region42: #{tpu_custom_call.1} parent=1 // pred_check
      _
    $region43: #{tpu_custom_call.1} parent=1 // pred_check_branch
      %1695 = sbr.rel (0) target = $region45
    $region44: #{tpu_custom_call.1} parent=1 // pred_region
      %s1697 = ssub.s32 256, 256
      %1698 = vsyncadd [#allocation4], %s1697
      %s1699 = sshll.u32 [#allocation8], 4
      %s1700 = int_to_ptr.vmem [resolvable:$true] %s1699
      %1705 = dma.vmem_to_hbm [thread:$0]  %s1700, 256, %s7, [#allocation4], 128, 128, 8
    $region45: #{tpu_custom_call.1} parent=1 // pred_fallthru
      _
    // Predicated region
    $region46: #{tpu_custom_call.1} parent=1 // pred_check
      _
    $region47: #{tpu_custom_call.1} parent=1 // pred_check_branch
      %1707 = sbr.rel (0) target = $region49
    $region48: #{tpu_custom_call.1} parent=1 // pred_region
      %s1709 = ssub.s32 1024, 1024
      %1710 = vsyncadd [#allocation10], %s1709
      %s1711 = sshll.u32 [#allocation9], 4
      %s1712 = int_to_ptr.vmem [resolvable:$true] %s1711
      %1717 = dma.vmem_to_hbm [thread:$0]  %s1712, 1024, %s8, [#allocation10], 128, 128, 8
    $region49: #{tpu_custom_call.1} parent=1 // pred_fallthru
      _
    // Predicated region
    $region50: #{tpu_custom_call.1} parent=1 // pred_check
      _
    $region51: #{tpu_custom_call.1} parent=1 // pred_check_branch
      %1719 = sbr.rel (0) target = $region53
    $region52: #{tpu_custom_call.1} parent=1 // pred_region
      %1720 = dma.done [#allocation4], 256
    $region53: #{tpu_custom_call.1} parent=1 // pred_fallthru
      _
    // Predicated region
    $region54: #{tpu_custom_call.1} parent=1 // pred_check
      _
    $region55: #{tpu_custom_call.1} parent=1 // pred_check_branch
      %1722 = sbr.rel (0) target = $region57
    $region56: #{tpu_custom_call.1} parent=1 // pred_region
      %1723 = dma.done [#allocation10], 1024
    $region57: #{tpu_custom_call.1} parent=1 // pred_fallthru
      _
    %1724 = vsyncpa [#allocation3], 1
    %1725 = vsyncpa [#allocation6], 1
    %1726 = vsyncpa [#allocation4], 1
    %1727 = vsyncpa [#allocation10], 1

</llo_original>
